<compile_context>
chip_gen: v7x
topology: tpu7x:2x2x1
jax: 0.10.0
libtpu: 0.0.40
codegen_flags: <defaults>
</compile_context>

<pallas_src>
import functools

import jax
import jax.numpy as jnp
from jax import lax
from jax.experimental import pallas as pl
from jax.experimental.pallas import tpu as pltpu


def _fold_rows_to_8(x):
    """(Bt, W) -> (8, W): log-depth pairwise tree over aligned 8-row groups."""
    parts = [x[r * 8:(r + 1) * 8, :] for r in range(x.shape[0] // 8)]
    while len(parts) > 1:
        nxt = [parts[i] + parts[i + 1] for i in range(0, len(parts) - 1, 2)]
        if len(parts) % 2:
            nxt.append(parts[-1])
        parts = nxt
    return parts[0]


def affinity_loss_kernel(pred_ref, label_ref, seg_ref, out_ref, *, C):
    step = pl.program_id(1)

    @pl.when(step == 0)
    def _init():
        out_ref[...] = jnp.zeros_like(out_ref)

    pred = pred_ref[...]                              # (Bt, C*C) f32
    label = label_ref[...].astype(jnp.float32)        # (Bt, C*C) int8 -> f32
    seg2 = seg_ref[...]                               # (C*C, 2C) [seg | seg*offdiag]
    bt, cc = pred.shape

    pl_prod = pred * label                            # reused by the matmul LHS

    # ---- unary BCE: hard {0,1} labels -> one clamped log per element ----
    p_true = jnp.where(label > 0.5, pred, 1.0 - pred)
    bce = -jnp.maximum(jnp.log(p_true), -100.0)       # (Bt, C*C)

    # ---- all per-row (length-C) reductions from ONE MXU matmul ----
    # LHS operands stacked along M so the (C*C, 2C) RHS is pushed once.
    lhs = jnp.concatenate([pred, label, pl_prod], axis=0)           # (3Bt, C*C)
    sums = jnp.dot(lhs, seg2, preferred_element_type=jnp.float32,
                   precision=lax.Precision.HIGHEST)                 # (3Bt, 2C)

    pred_sum = sums[0:bt, 0:C]              # sum(pred)
    lab_sum = sums[bt:2 * bt, 0:C]          # sum(label)            (exact int)
    vt_sum = sums[bt:2 * bt, C:2 * C]       # sum(offdiag * label)  (exact int)
    pl_sum = sums[2 * bt:3 * bt, 0:C]       # sum(pred * label)
    pv_sum = sums[2 * bt:3 * bt, C:2 * C]   # sum(pred * offdiag * label)

    oml_sum = float(C) - lab_sum                       # sum(1 - label)
    # sum((1-pred)(1-label)) = sum(1-label) - sum(pred*(1-label)); this
    # grouping keeps the all-ones-label row exactly 0 (matches torch), and the
    # clamp guards against tiny negative rounding residue before the log.
    spec_num = jnp.maximum(oml_sum - (pred_sum - pl_sum), 0.0)

    def safe_div(num, den):
        # matches torch: denominator.masked_fill_(~(den > 0), 1)
        return num / jnp.where(den > 0.0, den, 1.0)

    def neg_log(x):
        return -jnp.maximum(jnp.log(x), -100.0)

    row_terms = (neg_log(safe_div(pv_sum, vt_sum))        # recall
                 + neg_log(safe_div(spec_num, oml_sum))   # specificity
                 + neg_log(safe_div(pv_sum, pred_sum)))   # precision   (Bt, C)

    # ---- epilogue: tree-fold to 8 sublanes, accumulate into ONE block ----
    # Row terms pre-scaled by C so a single 1/(B*C*C) normalizer applies.
    out_ref[...] += _fold_rows_to_8(bce)
    out_ref[:, 0:C] += _fold_rows_to_8(row_terms) * float(C)


def affinity_loss(cls_score, label, *, block_b=1024):
    """cls_score, label: (B, C, C).  Returns the scalar AffinityLoss.

    NOTE: assumes hard {0,1} affinity targets (as produced by the reference
    pipeline); soft labels would diverge from the PyTorch BCE.
    """
    B, C, C2 = cls_score.shape
    assert C == C2, "affinity matrices must be square"
    CC = C * C

    pred_flat = cls_score.reshape(B, CC).astype(jnp.float32)
    label_flat = label.reshape(B, CC).astype(jnp.int8)   # {0,1} exact in int8

    # Batch tiling: always 2 "parallel" parts (keeps both v7x TensorCores busy,
    # harmless on single-TC v5e/v6e); Bt a multiple of 32 (int8 sublane tiling).
    num_parts = 2
    b_half = -(-B // num_parts)
    b_half = ((b_half + 31) // 32) * 32
    Bt = max(32, min(((block_b + 31) // 32) * 32, b_half))
    n_steps = -(-b_half // Bt)
    B_pad = num_parts * n_steps * Bt

    if B_pad > B:
        # Padding rows with pred = label = 1 - eye(C) contribute exactly 0 to
        # the BCE and to every recall/specificity/precision term.
        pad = jnp.broadcast_to(
            (1.0 - jnp.eye(C, dtype=jnp.float32)).reshape(1, CC),
            (B_pad - B, CC))
        pred_flat = jnp.concatenate([pred_flat, pad], axis=0)
        label_flat = jnp.concatenate(
            [label_flat, pad.astype(jnp.int8)], axis=0)

    # Static (CC, 2C) 0/1 reduction matrix [seg | seg*offdiag], built once on
    # the host and kept VMEM-resident across all grid steps.
    row_of = jnp.arange(CC, dtype=jnp.int32) // C
    seg = (row_of[:, None] == jnp.arange(C, dtype=jnp.int32)[None, :]
           ).astype(jnp.float32)                                     # (CC, C)
    offdiag = 1.0 - jnp.eye(C, dtype=jnp.float32).reshape(CC, 1)     # (CC, 1)
    seg2 = jnp.concatenate([seg, seg * offdiag], axis=1)             # (CC, 2C)

    kernel = functools.partial(affinity_loss_kernel, C=C)
    in_idx = lambda c, s: (c * n_steps + s, 0)

    acc = pl.pallas_call(
        kernel,
        out_shape=jax.ShapeDtypeStruct((num_parts * 8, CC), jnp.float32),
        grid_spec=pltpu.PrefetchScalarGridSpec(
            num_scalar_prefetch=0,
            grid=(num_parts, n_steps),
            in_specs=[
                pl.BlockSpec((Bt, CC), in_idx),
                pl.BlockSpec((Bt, CC), in_idx),
                pl.BlockSpec((CC, 2 * C), lambda c, s: (0, 0)),
            ],
            out_specs=pl.BlockSpec((8, CC), lambda c, s: (c, 0)),
        ),
        compiler_params=pltpu.CompilerParams(
            dimension_semantics=("parallel", "arbitrary"),
            vmem_limit_bytes=48 << 20),
    )(pred_flat, label_flat, seg2)

    # Tiny final scalar collapse in plain JAX; single normalizer because the
    # per-row terms were pre-scaled by C inside the kernel.
    return jnp.sum(acc) / jnp.float32(B * C * C)


def affinity_loss_ref(cls_score, label):
    """Pure-JAX reference mirroring the PyTorch forward."""
    pred = cls_score.astype(jnp.float32)
    lab = label.astype(jnp.float32)
    B, C, _ = pred.shape
    log_p = jnp.maximum(jnp.log(pred), -100.0)
    log_1mp = jnp.maximum(jnp.log(1.0 - pred), -100.0)
    unary = jnp.mean(-(lab * log_p + (1.0 - lab) * log_1mp))

    diag = 1.0 - jnp.eye(C, dtype=jnp.float32)
    vtarget = diag[None] * lab

    def safe_div(n, d):
        return n / jnp.where(d > 0, d, 1.0)

    recall = safe_div(jnp.sum(pred * vtarget, 2), jnp.sum(vtarget, 2))
    spec = safe_div(jnp.sum((1 - pred) * (1 - lab), 2), jnp.sum(1 - lab, 2))
    prec = safe_div(jnp.sum(pred * vtarget, 2), jnp.sum(pred, 2))
    bce1 = lambda x: jnp.mean(-jnp.maximum(jnp.log(x), -100.0))
    return unary + bce1(recall) + bce1(spec) + bce1(prec)


if __name__ == "__main__":
    key = jax.random.PRNGKey(0)
    C = 16

    # Small case (B=2): one step per part, heavy zero-loss padding.
    B = 2
    k1, k2, k3, k4 = jax.random.split(key, 4)
    cls_score = jax.nn.sigmoid(jax.random.normal(k1, (B, C, C), dtype=jnp.float32))
    lab = (jax.random.uniform(k2, (B, C, C)) > 0.5).astype(jnp.float32)

    loss = affinity_loss(cls_score, lab)
    jax.block_until_ready(loss)
    ref = affinity_loss_ref(cls_score, lab)
    assert jnp.allclose(loss, ref, rtol=1e-5, atol=1e-5), (loss, ref)

    # Larger case: 2 parallel parts, multi-step accumulation, batch padding.
    B2 = 96
    cls2 = jax.nn.sigmoid(jax.random.normal(k3, (B2, C, C), dtype=jnp.float32))
    lab2 = (jax.random.uniform(k4, (B2, C, C)) > 0.5).astype(jnp.float32)
    loss2 = affinity_loss(cls2, lab2, block_b=32)
    jax.block_until_ready(loss2)
    ref2 = affinity_loss_ref(cls2, lab2)
    assert jnp.allclose(loss2, ref2, rtol=1e-5, atol=1e-5), (loss2, ref2)

    print("KERNEL_OK")
</pallas_src>

<mosaic_0001>
module attributes {stable_mosaic.version = 11 : i64} {
  func.func @affinity_loss_kernel(%arg0: i32, %arg1: i32, %arg2: memref<32x256xf32, #tpu.memory_space<vmem>>, %arg3: memref<32x256xi8, #tpu.memory_space<vmem>>, %arg4: memref<256x32xf32, #tpu.memory_space<vmem>>, %arg5: memref<8x256xf32, #tpu.memory_space<vmem>>) attributes {dimension_semantics = [#tpu.dimension_semantics<parallel>, #tpu.dimension_semantics<arbitrary>], iteration_bounds = array<i64: 2, 1>, scalar_prefetch = 0 : i64, scratch_operands = 0 : i64, tpu.core_type = #tpu.core_type<tc>, window_params = [{transform_indices = @transform_0, window_bounds = array<i64: 32, 256>}, {transform_indices = @transform_1, window_bounds = array<i64: 32, 256>}, {pipeline_mode = #tpu.pipeline_mode<synchronous>, transform_indices = @transform_2, window_bounds = array<i64: 256, 32>}, {transform_indices = @transform_3, window_bounds = array<i64: 8, 256>}]} {
    %c0_i32 = arith.constant 0 : i32
    %0 = arith.cmpi eq, %arg1, %c0_i32 : i32
    %1 = arith.extui %0 : i1 to i32
    %c0_i32_0 = arith.constant 0 : i32
    %2 = arith.cmpi ne, %1, %c0_i32_0 : i32
    scf.if %2 {
      %cst_33 = arith.constant 0.000000e+00 : f32
      %85 = vector.broadcast %cst_33 : f32 to vector<8x256xf32>
      %c0_34 = arith.constant 0 : index
      %c0_35 = arith.constant 0 : index
      %86 = vector.load %arg5[%c0_34, %c0_35] : memref<8x256xf32, #tpu.memory_space<vmem>>, vector<8x256xf32>
      tpu.vector_store %arg5[%c0_34, %c0_35], %85 {strides = array<i32>} : memref<8x256xf32, #tpu.memory_space<vmem>>, vector<8x256xf32>,
    } else {
    }
    %c0 = arith.constant 0 : index
    %c0_1 = arith.constant 0 : index
    %3 = vector.load %arg2[%c0, %c0_1] : memref<32x256xf32, #tpu.memory_space<vmem>>, vector<32x256xf32>
    %c0_2 = arith.constant 0 : index
    %c0_3 = arith.constant 0 : index
    %4 = vector.load %arg3[%c0_2, %c0_3] : memref<32x256xi8, #tpu.memory_space<vmem>>, vector<32x256xi8>
    %5 = arith.sitofp %4 : vector<32x256xi8> to vector<32x256xf32>
    %c0_4 = arith.constant 0 : index
    %c0_5 = arith.constant 0 : index
    %6 = vector.load %arg4[%c0_4, %c0_5] : memref<256x32xf32, #tpu.memory_space<vmem>>, vector<256x32xf32>
    %7 = arith.mulf %3, %5 : vector<32x256xf32>
    %cst = arith.constant 5.000000e-01 : f32
    %8 = vector.broadcast %cst : f32 to vector<32x256xf32>
    %9 = arith.cmpf ogt, %5, %8 : vector<32x256xf32>
    %cst_6 = arith.constant 1.000000e+00 : f32
    %10 = vector.broadcast %cst_6 : f32 to vector<32x256xf32>
    %11 = arith.subf %10, %3 : vector<32x256xf32>
    %12 = arith.select %9, %3, %11 : vector<32x256xi1>, vector<32x256xf32>
    %13 = math.log %12 : vector<32x256xf32>
    %cst_7 = arith.constant -1.000000e+02 : f32
    %14 = vector.broadcast %cst_7 : f32 to vector<32x256xf32>
    %15 = arith.maximumf %13, %14 : vector<32x256xf32>
    %cst_8 = arith.constant 0.000000e+00 : f32
    %16 = vector.broadcast %cst_8 : f32 to vector<32x256xf32>
    %17 = arith.subf %16, %15 : vector<32x256xf32>
    %18 = tpu.concatenate %3, %5, %7 in 0 : vector<32x256xf32>, vector<32x256xf32>, vector<32x256xf32> -> vector<96x256xf32>
    %cst_9 = arith.constant dense<0.000000e+00> : vector<96x32xf32>
    %19 = tpu.matmul %18, %6, %cst_9 {dimension_numbers = #tpu.dot_dimension_numbers<[1], [0], [0], [1], [0, 0, 1, 1], [], []>, precision = #tpu.contract_precision<fp32>} : vector<96x256xf32>, vector<256x32xf32>, vector<96x32xf32> -> vector<96x32xf32>
    %20 = vector.extract_strided_slice %19 {offsets = [0, 0], sizes = [32, 16], strides = [1, 1]} : vector<96x32xf32> to vector<32x16xf32>
    %21 = vector.extract_strided_slice %19 {offsets = [32, 0], sizes = [32, 16], strides = [1, 1]} : vector<96x32xf32> to vector<32x16xf32>
    %22 = vector.extract_strided_slice %19 {offsets = [32, 16], sizes = [32, 16], strides = [1, 1]} : vector<96x32xf32> to vector<32x16xf32>
    %23 = vector.extract_strided_slice %19 {offsets = [64, 0], sizes = [32, 16], strides = [1, 1]} : vector<96x32xf32> to vector<32x16xf32>
    %24 = vector.extract_strided_slice %19 {offsets = [64, 16], sizes = [32, 16], strides = [1, 1]} : vector<96x32xf32> to vector<32x16xf32>
    %cst_10 = arith.constant 1.600000e+01 : f32
    %25 = vector.broadcast %cst_10 : f32 to vector<32x16xf32>
    %26 = arith.subf %25, %21 : vector<32x16xf32>
    %27 = arith.subf %20, %23 : vector<32x16xf32>
    %28 = arith.subf %26, %27 : vector<32x16xf32>
    %cst_11 = arith.constant 0.000000e+00 : f32
    %29 = vector.broadcast %cst_11 : f32 to vector<32x16xf32>
    %30 = arith.maximumf %28, %29 : vector<32x16xf32>
    %cst_12 = arith.constant 0.000000e+00 : f32
    %31 = vector.broadcast %cst_12 : f32 to vector<32x16xf32>
    %32 = arith.cmpf ogt, %22, %31 : vector<32x16xf32>
    %cst_13 = arith.constant 1.000000e+00 : f32
    %33 = vector.broadcast %cst_13 : f32 to vector<32x16xf32>
    %34 = arith.select %32, %22, %33 : vector<32x16xi1>, vector<32x16xf32>
    %35 = arith.divf %24, %34 : vector<32x16xf32>
    %36 = math.log %35 : vector<32x16xf32>
    %cst_14 = arith.constant -1.000000e+02 : f32
    %37 = vector.broadcast %cst_14 : f32 to vector<32x16xf32>
    %38 = arith.maximumf %36, %37 : vector<32x16xf32>
    %cst_15 = arith.constant 0.000000e+00 : f32
    %39 = vector.broadcast %cst_15 : f32 to vector<32x16xf32>
    %40 = arith.subf %39, %38 : vector<32x16xf32>
    %cst_16 = arith.constant 0.000000e+00 : f32
    %41 = vector.broadcast %cst_16 : f32 to vector<32x16xf32>
    %42 = arith.cmpf ogt, %26, %41 : vector<32x16xf32>
    %cst_17 = arith.constant 1.000000e+00 : f32
    %43 = vector.broadcast %cst_17 : f32 to vector<32x16xf32>
    %44 = arith.select %42, %26, %43 : vector<32x16xi1>, vector<32x16xf32>
    %45 = arith.divf %30, %44 : vector<32x16xf32>
    %46 = math.log %45 : vector<32x16xf32>
    %cst_18 = arith.constant -1.000000e+02 : f32
    %47 = vector.broadcast %cst_18 : f32 to vector<32x16xf32>
    %48 = arith.maximumf %46, %47 : vector<32x16xf32>
    %cst_19 = arith.constant 0.000000e+00 : f32
    %49 = vector.broadcast %cst_19 : f32 to vector<32x16xf32>
    %50 = arith.subf %49, %48 : vector<32x16xf32>
    %51 = arith.addf %40, %50 : vector<32x16xf32>
    %cst_20 = arith.constant 0.000000e+00 : f32
    %52 = vector.broadcast %cst_20 : f32 to vector<32x16xf32>
    %53 = arith.cmpf ogt, %20, %52 : vector<32x16xf32>
    %cst_21 = arith.constant 1.000000e+00 : f32
    %54 = vector.broadcast %cst_21 : f32 to vector<32x16xf32>
    %55 = arith.select %53, %20, %54 : vector<32x16xi1>, vector<32x16xf32>
    %56 = arith.divf %24, %55 : vector<32x16xf32>
    %57 = math.log %56 : vector<32x16xf32>
    %cst_22 = arith.constant -1.000000e+02 : f32
    %58 = vector.broadcast %cst_22 : f32 to vector<32x16xf32>
    %59 = arith.maximumf %57, %58 : vector<32x16xf32>
    %cst_23 = arith.constant 0.000000e+00 : f32
    %60 = vector.broadcast %cst_23 : f32 to vector<32x16xf32>
    %61 = arith.subf %60, %59 : vector<32x16xf32>
    %62 = arith.addf %51, %61 : vector<32x16xf32>
    %c0_24 = arith.constant 0 : index
    %c0_25 = arith.constant 0 : index
    %63 = vector.load %arg5[%c0_24, %c0_25] : memref<8x256xf32, #tpu.memory_space<vmem>>, vector<8x256xf32>
    %64 = vector.extract_strided_slice %17 {offsets = [0, 0], sizes = [8, 256], strides = [1, 1]} : vector<32x256xf32> to vector<8x256xf32>
    %65 = vector.extract_strided_slice %17 {offsets = [8, 0], sizes = [8, 256], strides = [1, 1]} : vector<32x256xf32> to vector<8x256xf32>
    %66 = vector.extract_strided_slice %17 {offsets = [16, 0], sizes = [8, 256], strides = [1, 1]} : vector<32x256xf32> to vector<8x256xf32>
    %67 = vector.extract_strided_slice %17 {offsets = [24, 0], sizes = [8, 256], strides = [1, 1]} : vector<32x256xf32> to vector<8x256xf32>
    %68 = arith.addf %64, %65 : vector<8x256xf32>
    %69 = arith.addf %66, %67 : vector<8x256xf32>
    %70 = arith.addf %68, %69 : vector<8x256xf32>
    %71 = arith.addf %63, %70 : vector<8x256xf32>
    %c0_26 = arith.constant 0 : index
    %c0_27 = arith.constant 0 : index
    %72 = vector.load %arg5[%c0_26, %c0_27] : memref<8x256xf32, #tpu.memory_space<vmem>>, vector<8x256xf32>
    tpu.vector_store %arg5[%c0_26, %c0_27], %71 {strides = array<i32>} : memref<8x256xf32, #tpu.memory_space<vmem>>, vector<8x256xf32>,
    %c0_28 = arith.constant 0 : index
    %c0_29 = arith.constant 0 : index
    %73 = vector.load %arg5[%c0_28, %c0_29] : memref<8x256xf32, #tpu.memory_space<vmem>>, vector<8x16xf32>
    %74 = vector.extract_strided_slice %62 {offsets = [0, 0], sizes = [8, 16], strides = [1, 1]} : vector<32x16xf32> to vector<8x16xf32>
    %75 = vector.extract_strided_slice %62 {offsets = [8, 0], sizes = [8, 16], strides = [1, 1]} : vector<32x16xf32> to vector<8x16xf32>
    %76 = vector.extract_strided_slice %62 {offsets = [16, 0], sizes = [8, 16], strides = [1, 1]} : vector<32x16xf32> to vector<8x16xf32>
    %77 = vector.extract_strided_slice %62 {offsets = [24, 0], sizes = [8, 16], strides = [1, 1]} : vector<32x16xf32> to vector<8x16xf32>
    %78 = arith.addf %74, %75 : vector<8x16xf32>
    %79 = arith.addf %76, %77 : vector<8x16xf32>
    %80 = arith.addf %78, %79 : vector<8x16xf32>
    %cst_30 = arith.constant 1.600000e+01 : f32
    %81 = vector.broadcast %cst_30 : f32 to vector<8x16xf32>
    %82 = arith.mulf %80, %81 : vector<8x16xf32>
    %83 = arith.addf %73, %82 : vector<8x16xf32>
    %c0_31 = arith.constant 0 : index
    %c0_32 = arith.constant 0 : index
    %84 = vector.load %arg5[%c0_31, %c0_32] : memref<8x256xf32, #tpu.memory_space<vmem>>, vector<8x16xf32>
    tpu.vector_store %arg5[%c0_31, %c0_32], %83 {strides = array<i32>} : memref<8x256xf32, #tpu.memory_space<vmem>>, vector<8x16xf32>,
    return
  }
  func.func @transform_0(%arg0: i32, %arg1: i32) -> (i32, i32) {
    %c1_i32 = arith.constant 1 : i32
    %0 = arith.muli %arg0, %c1_i32 : i32
    %1 = arith.addi %0, %arg1 : i32
    %c0_i32 = arith.constant 0 : i32
    %c0_i32_0 = arith.constant 0 : i32
    return %1, %c0_i32 : i32, i32
  }
  func.func @transform_1(%arg0: i32, %arg1: i32) -> (i32, i32) {
    %c1_i32 = arith.constant 1 : i32
    %0 = arith.muli %arg0, %c1_i32 : i32
    %1 = arith.addi %0, %arg1 : i32
    %c0_i32 = arith.constant 0 : i32
    %c0_i32_0 = arith.constant 0 : i32
    return %1, %c0_i32 : i32, i32
  }
  func.func @transform_2(%arg0: i32, %arg1: i32) -> (i32, i32) {
    %c0_i32 = arith.constant 0 : i32
    %c0_i32_0 = arith.constant 0 : i32
    %c0_i32_1 = arith.constant 0 : i32
    return %c0_i32, %c0_i32_0 : i32, i32
  }
  func.func @transform_3(%arg0: i32, %arg1: i32) -> (i32, i32) {
    %c0_i32 = arith.constant 0 : i32
    %c0_i32_0 = arith.constant 0 : i32
    return %arg0, %c0_i32 : i32, i32
  }
}

</mosaic_0001>

<llo_original>
// kernel: tpu_custom_call.1
$region0: #{tpu_custom_call.1}
  #allocation0 [shape = 'u32[]', space=smem, size = 0x4, offset = 0x4, fixed_abs, tag = 'smem constant byte address 0x4 - core index']
  #allocation1 [shape = 'u32[144,128]{1,0:T(1,128)}', space=vmem, size = 0x12000, scoped, tag = 'internal scratch']
  %s0 = inlined_call_operand.vmem [shape: f32[64,256], index: 0, kind: input, shape index: {}]
  %s1 = inlined_call_operand.vmem [shape: s8[64,256], index: 1, kind: input, shape index: {}]
  %s2 = inlined_call_operand.vmem [shape: f32[256,32], index: 2, kind: input, shape index: {}]
  %s3 = inlined_call_operand.hbm [shape: f32[16,256], index: 3, kind: output, shape index: {}]
  %s4 = sld [smem:[#allocation0]]
  $region49: #{tpu_custom_call.1} parent=0
    _
  %s6 = ssub.s32 1, %s4
  %s7 = scalar_select 0, %s6, %s4
  $region1: #{tpu_custom_call.1} parent=0
    #allocation2 [shape = 'u8[16384]{0}', space=vmem, size = 0x4000, scoped, tag = 'output window, operand 0']
    #allocation3 [shape = 's32[2]{0}', space=sflag, size = 0x8, scoped, tag = 'scoped memory for tpu_custom_call.1']
    %8 = vsyncpa [#allocation3], 0
    %s9 = scalar_lea.sflag [#allocation3], 1
    %10 = vsyncpa %s9, 0
    loop: start=0, step=1, limit=4
    $region2: #{tpu_custom_call.1} parent=1 // loop_pre_header
      _
    $region3: #{tpu_custom_call.1} parent=1 // loop_header
      %s12 = sphi 0, %s16
      %p13 = scmp.ge.s32.totalorder %s12, 4
      %s19 = sphi 0, %s31
      %s20 = sphi 0, %s27
      %s21 = sphi 0, %s19
      %s22 = sphi 0, %s20
      %s23 = sphi 0, %s21
      %s24 = sphi 0, %s22
      %s36 = sphi 0, %s38
      %s39 = sphi 0, %s36
      %s40 = sphi 0, %s39
      %s56 = sphi 0, %s40
      %s64 = sphi 0, %s66
      %s67 = sphi 0, %s64
      %s68 = sphi 0, %s67
      %s84 = sphi 0, %s68
      %s88 = sphi 0, %s88
      %s90 = sphi 0, %s88
      %s91 = sphi 0, %s90
      %s105 = sphi 0, %s91
      %s111 = sphi 0, %s113
      %s114 = sphi 0, %s111
      %s115 = sphi 0, %s114
      %s131 = sphi 0, %s115
    $region4: #{tpu_custom_call.1} parent=1 // loop_header_branch
      %15 = sbr.rel (%p13) target = $region8
    $region5: #{tpu_custom_call.1} parent=1 // loop_body
      %s17 = ssub.s32 %s12, 1
      %s18 = ssub.s32 %s12, 2
      %s25 = sadd.s32 1, %s20
      %p26 = scmp.ge.s32.totalorder %s25, 1
      %s27 = scalar_select %p26, 0, %s25
      %s28 = sadd.s32 1, %s19
      %s29 = scalar_select %p26, %s28, %s19
      %p30 = scmp.ge.s32.totalorder %s29, 2
      %s31 = scalar_select %p30, 0, %s29
      %s32 = sadd.s32 %s19, %s20
      %s33 = sadd.s32 %s31, %s27
      %s34 = ssub.s32 %s32, %s33
      %p35 = scmp.eq.s32.totalorder %s34, 0
      %s37 = sadd.s32 %s36, 1
      %s38 = scalar_select %p35, %s36, %s37
      %p41 = pneg %p35
      %p42 = scmp.eq.s32.totalorder %s12, 1
      %p43 = por %p41, %p42
      %p44 = scmp.ne.s32.totalorder %s36, %s39
      %p45 = scmp.eq.s32.totalorder %s12, 0
      %p46 = por %p44, %p45
      %p47 = scmp.ne.s32.totalorder %s36, %s39
      %p48 = scmp.eq.s32.totalorder %s17, 1
      %p49 = por %p47, %p48
      %p50 = scmp.ne.s32.totalorder %s39, %s40
      %p51 = scmp.eq.s32.totalorder %s17, 0
      %p52 = por %p50, %p51
      %p53 = scmp.ne.s32.totalorder %s39, %s40
      %p54 = scmp.eq.s32.totalorder %s18, 1
      %p55 = por %p53, %p54
      %p57 = scmp.ne.s32.totalorder %s40, %s56
      %p58 = scmp.eq.s32.totalorder %s18, 0
      %p59 = por %p57, %p58
      %s60 = sadd.s32 %s19, %s20
      %s61 = sadd.s32 %s31, %s27
      %s62 = ssub.s32 %s60, %s61
      %p63 = scmp.eq.s32.totalorder %s62, 0
      %s65 = sadd.s32 %s64, 1
      %s66 = scalar_select %p63, %s64, %s65
      %p69 = pneg %p63
      %p70 = scmp.eq.s32.totalorder %s12, 1
      %p71 = por %p69, %p70
      %p72 = scmp.ne.s32.totalorder %s64, %s67
      %p73 = scmp.eq.s32.totalorder %s12, 0
      %p74 = por %p72, %p73
      %p75 = scmp.ne.s32.totalorder %s64, %s67
      %p76 = scmp.eq.s32.totalorder %s17, 1
      %p77 = por %p75, %p76
      %p78 = scmp.ne.s32.totalorder %s67, %s68
      %p79 = scmp.eq.s32.totalorder %s17, 0
      %p80 = por %p78, %p79
      %p81 = scmp.ne.s32.totalorder %s67, %s68
      %p82 = scmp.eq.s32.totalorder %s18, 1
      %p83 = por %p81, %p82
      %p85 = scmp.ne.s32.totalorder %s68, %s84
      %p86 = scmp.eq.s32.totalorder %s18, 0
      %p87 = por %p85, %p86
      %s89 = sadd.s32 %s88, 1
      %p92 = scmp.eq.s32.totalorder %s12, 1
      %p93 = scmp.ne.s32.totalorder %s88, %s90
      %p94 = scmp.eq.s32.totalorder %s12, 0
      %p95 = por %p93, %p94
      %p96 = scmp.ne.s32.totalorder %s88, %s90
      %p97 = scmp.eq.s32.totalorder %s17, 1
      %p98 = por %p96, %p97
      %p99 = scmp.ne.s32.totalorder %s90, %s91
      %p100 = scmp.eq.s32.totalorder %s17, 0
      %p101 = por %p99, %p100
      %p102 = scmp.ne.s32.totalorder %s90, %s91
      %p103 = scmp.eq.s32.totalorder %s18, 1
      %p104 = por %p102, %p103
      %p106 = scmp.ne.s32.totalorder %s91, %s105
      %p107 = scmp.eq.s32.totalorder %s18, 0
      %p108 = por %p106, %p107
      %s109 = ssub.s32 %s19, %s31
      %p110 = scmp.eq.s32.totalorder %s109, 0
      %s112 = sadd.s32 %s111, 1
      %s113 = scalar_select %p110, %s111, %s112
      %p116 = pneg %p110
      %p117 = scmp.eq.s32.totalorder %s12, 1
      %p118 = por %p116, %p117
      %p119 = scmp.ne.s32.totalorder %s111, %s114
      %p120 = scmp.eq.s32.totalorder %s12, 0
      %p121 = por %p119, %p120
      %p122 = scmp.ne.s32.totalorder %s111, %s114
      %p123 = scmp.eq.s32.totalorder %s17, 1
      %p124 = por %p122, %p123
      %p125 = scmp.ne.s32.totalorder %s114, %s115
      %p126 = scmp.eq.s32.totalorder %s17, 0
      %p127 = por %p125, %p126
      %p128 = scmp.ne.s32.totalorder %s114, %s115
      %p129 = scmp.eq.s32.totalorder %s18, 1
      %p130 = por %p128, %p129
      %p132 = scmp.ne.s32.totalorder %s115, %s131
      %p133 = scmp.eq.s32.totalorder %s18, 0
      %p134 = por %p132, %p133
      %p135 = scmp.le.s32.totalorder 1, %s12
      %p136 = scmp.lt.s32.totalorder %s12, 3
      %p137 = pnand %p135, %p136
      %p138 = pneg %p137
      // Predicated region
      $region9: #{tpu_custom_call.1} parent=5 // pred_check
        _
      $region10: #{tpu_custom_call.1} parent=5 // pred_check_branch
        %140 = sbr.rel (%p137) target = $region12
      $region11: #{tpu_custom_call.1} parent=5 // pred_region
        %s141 = ssub.s32 %s12, 1
        // Predicated region
        $region13: #{tpu_custom_call.1} parent=11 // pred_check
          %p142 = pneg %p101
        $region14: #{tpu_custom_call.1} parent=11 // pred_check_branch
          %144 = sbr.rel (%p142) target = $region16
        $region15: #{tpu_custom_call.1} parent=11 // pred_region
          _
        $region16: #{tpu_custom_call.1} parent=11 // pred_fallthru
          _
      $region12: #{tpu_custom_call.1} parent=5 // pred_fallthru
        _
      %p145 = scmp.lt.s32.totalorder %s12, 2
      // Predicated region
      $region17: #{tpu_custom_call.1} parent=5 // pred_check
        %p146 = pneg %p145
      $region18: #{tpu_custom_call.1} parent=5 // pred_check_branch
        %148 = sbr.rel (%p146) target = $region20
      $region19: #{tpu_custom_call.1} parent=5 // pred_region
        // Predicated region
        $region21: #{tpu_custom_call.1} parent=19 // pred_check
          %p149 = pneg %p46
        $region22: #{tpu_custom_call.1} parent=19 // pred_check_branch
          %151 = sbr.rel (%p149) target = $region24
        $region23: #{tpu_custom_call.1} parent=19 // pred_region
          %s152 = sadd.s32 %s19, %s20
          %s153 = smul.u32 4, %s152
          %p154 = scmp.lt.s32.totalorder %s153, 7
          %s155 = scalar_select %p154, %s153, 7
          %s156 = smul.addr %s155, 2
          %s157 = smul.addr %s156, 8
          %s158 = scalar_lea.vmem %s0, %s157
          %s159 = sadd.s32 %s19, %s20
          %s160 = smul.u32 4, %s159
        $region24: #{tpu_custom_call.1} parent=19 // pred_fallthru
          _
        // Predicated region
        $region25: #{tpu_custom_call.1} parent=19 // pred_check
          %p161 = pneg %p74
        $region26: #{tpu_custom_call.1} parent=19 // pred_check_branch
          %163 = sbr.rel (%p161) target = $region28
        $region27: #{tpu_custom_call.1} parent=19 // pred_region
          %s164 = sadd.s32 %s19, %s20
          %p165 = scmp.lt.s32.totalorder %s164, 1
          %s166 = scalar_select %p165, %s164, 1
          %s167 = smul.addr %s166, 2
          %s168 = smul.addr %s167, 8
          %s169 = scalar_lea.vmem %s1, %s168
          %s170 = sadd.s32 %s19, %s20
        $region28: #{tpu_custom_call.1} parent=19 // pred_fallthru
          _
      $region20: #{tpu_custom_call.1} parent=5 // pred_fallthru
        _
      %p171 = scmp.le.s32.totalorder 1, %s12
      %p172 = scmp.lt.s32.totalorder %s12, 3
      %p173 = pnand %p171, %p172
      %p174 = pneg %p173
      // Predicated region
      $region29: #{tpu_custom_call.1} parent=5 // pred_check
        _
      $region30: #{tpu_custom_call.1} parent=5 // pred_check_branch
        %176 = sbr.rel (%p173) target = $region32
      $region31: #{tpu_custom_call.1} parent=5 // pred_region
        %s177 = ssub.s32 %s12, 1
        %s178 = sadd.s32 %s21, %s22
        %s179 = smul.u32 4, %s178
        %p180 = scmp.lt.s32.totalorder %s179, 7
        %s181 = scalar_select %p180, %s179, 7
        %s182 = smul.addr %s181, 2
        %s183 = smul.addr %s182, 8
        %s184 = scalar_lea.vmem %s0, %s183
        %p185 = pneg %p52
        %p186 = pneg %p49
        %s187 = sadd.s32 %s21, %s22
        %p188 = scmp.lt.s32.totalorder %s187, 1
        %s189 = scalar_select %p188, %s187, 1
        %s190 = smul.addr %s189, 2
        %s191 = smul.addr %s190, 8
        %s192 = scalar_lea.vmem %s1, %s191
        %p193 = pneg %p80
        %p194 = pneg %p77
        %p195 = pneg %p101
        %p196 = pneg %p98
        %p197 = pneg %p127
        %p198 = pneg %p124
        %s199 = sand.u32 %s114, 1
        %s200 = scalar_lea.sflag [#allocation3], %s199
        %s201 = sand.u32 %s114, 1
        %s202 = smul.addr %s201, 16
        %s203 = scalar_lea.vmem [#allocation2], %s202
        %s204 = sadd.s32 %s21, %s22
        %s205 = smul.u32 4, %s204
        %p206 = scmp.lt.s32.totalorder %s205, 7
        %s207 = scalar_select %p206, %s205, 7
        %s208 = smul.addr %s207, 2
        %s209 = smul.addr %s208, 8
        %s210 = scalar_lea.vmem %s0, %s209
        %s211 = sadd.s32 %s21, %s22
        %s212 = smul.u32 4, %s211
        %s213 = sadd.s32 %s21, %s22
        %p214 = scmp.lt.s32.totalorder %s213, 1
        %s215 = scalar_select %p214, %s213, 1
        %s216 = smul.addr %s215, 2
        %s217 = smul.addr %s216, 8
        %s218 = scalar_lea.vmem %s1, %s217
        %s219 = sadd.s32 %s21, %s22
        %p220 = scmp.eq.s32.totalorder %s22, 0
        // Predicated region
        $region33: #{tpu_custom_call.1} parent=31 // pred_check
          %p221 = pneg %p220
        $region34: #{tpu_custom_call.1} parent=31 // pred_check_branch
          %223 = sbr.rel (%p221) target = $region36
        $region35: #{tpu_custom_call.1} parent=31 // pred_region
          %224 = vst [vmem:[%s203] sm:$0xff] 0.0
          %225 = vst [vmem:[%s203 + $0x8] sm:$0xff] 0.0
        $region36: #{tpu_custom_call.1} parent=31 // pred_fallthru
          _
        %v226 = vld [vmem:[%s210] sm:$0xff]
        %v227 = vld [vmem:[%s210 + $0x8] sm:$0xff]
        %v228 = vld [vmem:[%s210 + $0x10] sm:$0xff]
        %v229 = vld [vmem:[%s210 + $0x18] sm:$0xff]
        %v230 = vld [vmem:[%s210 + $0x20] sm:$0xff]
        %v231 = vld [vmem:[%s210 + $0x28] sm:$0xff]
        %v232 = vld [vmem:[%s210 + $0x30] sm:$0xff]
        %v233 = vld [vmem:[%s210 + $0x38] sm:$0xff]
        %v234 = vld [vmem:[%s218] sm:$0xff]
        %v235 = vld [vmem:[%s218 + $0x8] sm:$0xff]
        %v236 = vunpack.c.0.s8 %v234
        %v237 = vunpack.c.0.s8 %v235
        %v238 = vunpack.c.1.s8 %v234
        %v239 = vunpack.c.1.s8 %v235
        %v240 = vunpack.c.2.s8 %v234
        %v241 = vunpack.c.2.s8 %v235
        %v242 = vunpack.c.3.s8 %v234
        %v243 = vunpack.c.3.s8 %v235
        %v244 = vcvt.s32.f32 %v236
        %v245 = vcvt.s32.f32 %v237
        %v246 = vcvt.s32.f32 %v238
        %v247 = vcvt.s32.f32 %v239
        %v248 = vcvt.s32.f32 %v240
        %v249 = vcvt.s32.f32 %v241
        %v250 = vcvt.s32.f32 %v242
        %v251 = vcvt.s32.f32 %v243
        %v252 = vld [vmem:[%s2] sm:$0xff]
        %v253 = vld [vmem:[%s2 + $0x8] sm:$0xff]
        %v254 = vld [vmem:[%s2 + $0x10] sm:$0xff]
        %v255 = vld [vmem:[%s2 + $0x18] sm:$0xff]
        %v256 = vld [vmem:[%s2 + $0x20] sm:$0xff]
        %v257 = vld [vmem:[%s2 + $0x28] sm:$0xff]
        %v258 = vld [vmem:[%s2 + $0x30] sm:$0xff]
        %v259 = vld [vmem:[%s2 + $0x38] sm:$0xff]
        %v260 = vld [vmem:[%s2 + $0x40] sm:$0xff]
        %v261 = vld [vmem:[%s2 + $0x48] sm:$0xff]
        %v262 = vld [vmem:[%s2 + $0x50] sm:$0xff]
        %v263 = vld [vmem:[%s2 + $0x58] sm:$0xff]
        %v264 = vld [vmem:[%s2 + $0x60] sm:$0xff]
        %v265 = vld [vmem:[%s2 + $0x68] sm:$0xff]
        %v266 = vld [vmem:[%s2 + $0x70] sm:$0xff]
        %v267 = vld [vmem:[%s2 + $0x78] sm:$0xff]
        %v268 = vld [vmem:[%s2 + $0x80] sm:$0xff]
        %v269 = vld [vmem:[%s2 + $0x88] sm:$0xff]
        %v270 = vld [vmem:[%s2 + $0x90] sm:$0xff]
        %v271 = vld [vmem:[%s2 + $0x98] sm:$0xff]
        %v272 = vld [vmem:[%s2 + $0xa0] sm:$0xff]
        %v273 = vld [vmem:[%s2 + $0xa8] sm:$0xff]
        %v274 = vld [vmem:[%s2 + $0xb0] sm:$0xff]
        %v275 = vld [vmem:[%s2 + $0xb8] sm:$0xff]
        %v276 = vld [vmem:[%s2 + $0xc0] sm:$0xff]
        %v277 = vld [vmem:[%s2 + $0xc8] sm:$0xff]
        %v278 = vld [vmem:[%s2 + $0xd0] sm:$0xff]
        %v279 = vld [vmem:[%s2 + $0xd8] sm:$0xff]
        %v280 = vld [vmem:[%s2 + $0xe0] sm:$0xff]
        %v281 = vld [vmem:[%s2 + $0xe8] sm:$0xff]
        %v282 = vld [vmem:[%s2 + $0xf0] sm:$0xff]
        %v283 = vld [vmem:[%s2 + $0xf8] sm:$0xff]
        %v284 = vmul.f32 %v226, %v244
        %v285 = vmul.f32 %v227, %v245
        %v286 = vmul.f32 %v228, %v246
        %v287 = vmul.f32 %v229, %v247
        %v288 = vmul.f32 %v230, %v248
        %v289 = vmul.f32 %v231, %v249
        %v290 = vmul.f32 %v232, %v250
        %v291 = vmul.f32 %v233, %v251
        %vm292 = vcmp.gt.f32.partialorder %v244, 0.5
        %vm293 = vcmp.gt.f32.partialorder %v245, 0.5
        %vm294 = vcmp.gt.f32.partialorder %v246, 0.5
        %vm295 = vcmp.gt.f32.partialorder %v247, 0.5
        %vm296 = vcmp.gt.f32.partialorder %v248, 0.5
        %vm297 = vcmp.gt.f32.partialorder %v249, 0.5
        %vm298 = vcmp.gt.f32.partialorder %v250, 0.5
        %vm299 = vcmp.gt.f32.partialorder %v251, 0.5
        %v300 = vsub.f32 1.0, %v226
        %v301 = vsub.f32 1.0, %v227
        %v302 = vsub.f32 1.0, %v228
        %v303 = vsub.f32 1.0, %v229
        %v304 = vsub.f32 1.0, %v230
        %v305 = vsub.f32 1.0, %v231
        %v306 = vsub.f32 1.0, %v232
        %v307 = vsub.f32 1.0, %v233
        %v308 = vsel %vm292, %v226, %v300
        %v309 = vsel %vm293, %v227, %v301
        %v310 = vsel %vm294, %v228, %v302
        %v311 = vsel %vm295, %v229, %v303
        %v312 = vsel %vm296, %v230, %v304
        %v313 = vsel %vm297, %v231, %v305
        %v314 = vsel %vm298, %v232, %v306
        %v315 = vsel %vm299, %v233, %v307
        %v316 = vlog2.pop %v308
        %v317 = vmul.f32 %v316, 0.6931472
        %v318 = vlog2.pop %v309
        %v319 = vmul.f32 %v318, 0.6931472
        %v320 = vlog2.pop %v310
        %v321 = vmul.f32 %v320, 0.6931472
        %v322 = vlog2.pop %v311
        %v323 = vmul.f32 %v322, 0.6931472
        %v324 = vlog2.pop %v312
        %v325 = vmul.f32 %v324, 0.6931472
        %v326 = vlog2.pop %v313
        %v327 = vmul.f32 %v326, 0.6931472
        %v328 = vlog2.pop %v314
        %v329 = vmul.f32 %v328, 0.6931472
        %v330 = vlog2.pop %v315
        %v331 = vmul.f32 %v330, 0.6931472
        %v332 = vmax.f32 %v317, -100.0
        %v333 = vmax.f32 %v319, -100.0
        %v334 = vmax.f32 %v321, -100.0
        %v335 = vmax.f32 %v323, -100.0
        %v336 = vmax.f32 %v325, -100.0
        %v337 = vmax.f32 %v327, -100.0
        %v338 = vmax.f32 %v329, -100.0
        %v339 = vmax.f32 %v331, -100.0
        %v340 = vsub.f32 0.0, %v332
        %v341 = vsub.f32 0.0, %v333
        %v342 = vsub.f32 0.0, %v334
        %v343 = vsub.f32 0.0, %v335
        %v344 = vsub.f32 0.0, %v336
        %v345 = vsub.f32 0.0, %v337
        %v346 = vsub.f32 0.0, %v338
        %v347 = vsub.f32 0.0, %v339
        %348 = vmatprep.subr.mxu0 0.0
        %v349 = vand.u32 %v252, 4294901760
        %350 = vmatpush1.msra.mxu0 %v349
        %351 = vmatprep.subr.mxu0 0.0
        %v352 = vand.u32 %v253, 4294901760
        %353 = vmatpush1.msra.mxu0 %v352
        %354 = vmatprep.subr.mxu0 0.0
        %v355 = vand.u32 %v254, 4294901760
        %356 = vmatpush1.msra.mxu0 %v355
        %357 = vmatprep.subr.mxu0 0.0
        %v358 = vand.u32 %v255, 4294901760
        %359 = vmatpush1.msra.mxu0 %v358
        %360 = vmatprep.subr.mxu0 0.0
        %v361 = vand.u32 %v256, 4294901760
        %362 = vmatpush1.msra.mxu0 %v361
        %363 = vmatprep.subr.mxu0 0.0
        %v364 = vand.u32 %v257, 4294901760
        %365 = vmatpush1.msra.mxu0 %v364
        %366 = vmatprep.subr.mxu0 0.0
        %v367 = vand.u32 %v258, 4294901760
        %368 = vmatpush1.msra.mxu0 %v367
        %369 = vmatprep.subr.mxu0 0.0
        %v370 = vand.u32 %v259, 4294901760
        %371 = vmatpush1.msra.mxu0 %v370
        %372 = vmatprep.subr.mxu0 0.0
        %v373 = vand.u32 %v260, 4294901760
        %374 = vmatpush1.msra.mxu0 %v373
        %375 = vmatprep.subr.mxu0 0.0
        %v376 = vand.u32 %v261, 4294901760
        %377 = vmatpush1.msra.mxu0 %v376
        %378 = vmatprep.subr.mxu0 0.0
        %v379 = vand.u32 %v262, 4294901760
        %380 = vmatpush1.msra.mxu0 %v379
        %381 = vmatprep.subr.mxu0 0.0
        %v382 = vand.u32 %v263, 4294901760
        %383 = vmatpush1.msra.mxu0 %v382
        %384 = vmatprep.subr.mxu0 0.0
        %v385 = vand.u32 %v264, 4294901760
        %386 = vmatpush1.msra.mxu0 %v385
        %387 = vmatprep.subr.mxu0 0.0
        %v388 = vand.u32 %v265, 4294901760
        %389 = vmatpush1.msra.mxu0 %v388
        %390 = vmatprep.subr.mxu0 0.0
        %v391 = vand.u32 %v266, 4294901760
        %392 = vmatpush1.msra.mxu0 %v391
        %393 = vmatprep.subr.mxu0 0.0
        %v394 = vand.u32 %v267, 4294901760
        %395 = vmatpush1.msra.mxu0 %v394
        %396 = vmatprep.subr.mxu0 0.0
        %v397 = vand.u32 %v268, 4294901760
        %398 = vmatpush1.msra.mxu0 %v397
        %399 = vmatprep.subr.mxu0 0.0
        %v400 = vand.u32 %v269, 4294901760
        %401 = vmatpush1.msra.mxu0 %v400
        %402 = vmatprep.subr.mxu0 0.0
        %v403 = vand.u32 %v270, 4294901760
        %404 = vmatpush1.msra.mxu0 %v403
        %405 = vmatprep.subr.mxu0 0.0
        %v406 = vand.u32 %v271, 4294901760
        %407 = vmatpush1.msra.mxu0 %v406
        %408 = vmatprep.subr.mxu0 0.0
        %v409 = vand.u32 %v272, 4294901760
        %410 = vmatpush1.msra.mxu0 %v409
        %411 = vmatprep.subr.mxu0 0.0
        %v412 = vand.u32 %v273, 4294901760
        %413 = vmatpush1.msra.mxu0 %v412
        %414 = vmatprep.subr.mxu0 0.0
        %v415 = vand.u32 %v274, 4294901760
        %416 = vmatpush1.msra.mxu0 %v415
        %417 = vmatprep.subr.mxu0 0.0
        %v418 = vand.u32 %v275, 4294901760
        %419 = vmatpush1.msra.mxu0 %v418
        %420 = vmatprep.subr.mxu0 0.0
        %v421 = vand.u32 %v276, 4294901760
        %422 = vmatpush1.msra.mxu0 %v421
        %423 = vmatprep.subr.mxu0 0.0
        %v424 = vand.u32 %v277, 4294901760
        %425 = vmatpush1.msra.mxu0 %v424
        %426 = vmatprep.subr.mxu0 0.0
        %v427 = vand.u32 %v278, 4294901760
        %428 = vmatpush1.msra.mxu0 %v427
        %429 = vmatprep.subr.mxu0 0.0
        %v430 = vand.u32 %v279, 4294901760
        %431 = vmatpush1.msra.mxu0 %v430
        %432 = vmatprep.subr.mxu0 0.0
        %v433 = vand.u32 %v280, 4294901760
        %434 = vmatpush1.msra.mxu0 %v433
        %435 = vmatprep.subr.mxu0 0.0
        %v436 = vand.u32 %v281, 4294901760
        %437 = vmatpush1.msra.mxu0 %v436
        %438 = vmatprep.subr.mxu0 0.0
        %v439 = vand.u32 %v282, 4294901760
        %440 = vmatpush1.msra.mxu0 %v439
        %441 = vmatprep.subr.mxu0 0.0
        %v442 = vand.u32 %v283, 4294901760
        %443 = vmatpush1.msra.mxu0 %v442
        %v444 = vand.u32 %v227, 4294901760
        %v445 = vsub.f32 %v227, %v444
        %v446 = vand.u32 %v445, 4294901760
        %v447 = vsub.f32 %v445, %v446
        %v448 = vand.u32 %v447, 4294901760
        %449 = vmatprep.mubr.f32.mxu0 %v448
        %v450 = vand.u32 %v226, 4294901760
        %v451 = vsub.f32 %v226, %v450
        %v452 = vand.u32 %v451, 4294901760
        %v453 = vsub.f32 %v451, %v452
        %v454 = vand.u32 %v453, 4294901760
        %455 = vmatmul.mubr.f32.gmra.mrb[0].mxu0 %v454
        %v456 = vpop.f32.mrb[0].mxu0
        %v457 = vadd.f32 0.0, %v456
        %v458 = vpop.f32.mrb[0].mxu0
        %v459 = vand.u32 %v229, 4294901760
        %v460 = vsub.f32 %v229, %v459
        %v461 = vand.u32 %v460, 4294901760
        %v462 = vsub.f32 %v460, %v461
        %v463 = vand.u32 %v462, 4294901760
        %464 = vmatprep.mubr.f32.mxu0 %v463
        %v465 = vand.u32 %v228, 4294901760
        %v466 = vsub.f32 %v228, %v465
        %v467 = vand.u32 %v466, 4294901760
        %v468 = vsub.f32 %v466, %v467
        %v469 = vand.u32 %v468, 4294901760
        %470 = vmatmul.mubr.f32.gmra.mrb[0].mxu0 %v469
        %v471 = vpop.f32.mrb[0].mxu0
        %v472 = vadd.f32 0.0, %v471
        %v473 = vpop.f32.mrb[0].mxu0
        %v474 = vand.u32 %v231, 4294901760
        %v475 = vsub.f32 %v231, %v474
        %v476 = vand.u32 %v475, 4294901760
        %v477 = vsub.f32 %v475, %v476
        %v478 = vand.u32 %v477, 4294901760
        %479 = vmatprep.mubr.f32.mxu0 %v478
        %v480 = vand.u32 %v230, 4294901760
        %v481 = vsub.f32 %v230, %v480
        %v482 = vand.u32 %v481, 4294901760
        %v483 = vsub.f32 %v481, %v482
        %v484 = vand.u32 %v483, 4294901760
        %485 = vmatmul.mubr.f32.gmra.mrb[0].mxu0 %v484
        %v486 = vpop.f32.mrb[0].mxu0
        %v487 = vadd.f32 0.0, %v486
        %v488 = vpop.f32.mrb[0].mxu0
        %v489 = vand.u32 %v233, 4294901760
        %v490 = vsub.f32 %v233, %v489
        %v491 = vand.u32 %v490, 4294901760
        %v492 = vsub.f32 %v490, %v491
        %v493 = vand.u32 %v492, 4294901760
        %494 = vmatprep.mubr.f32.mxu0 %v493
        %v495 = vand.u32 %v232, 4294901760
        %v496 = vsub.f32 %v232, %v495
        %v497 = vand.u32 %v496, 4294901760
        %v498 = vsub.f32 %v496, %v497
        %v499 = vand.u32 %v498, 4294901760
        %500 = vmatmul.mubr.f32.gmra.mrb[0].mxu0 %v499
        %v501 = vpop.f32.mrb[0].mxu0
        %v502 = vadd.f32 0.0, %v501
        %v503 = vpop.f32.mrb[0].mxu0
        %v504 = vand.u32 %v245, 4294901760
        %v505 = vsub.f32 %v245, %v504
        %v506 = vand.u32 %v505, 4294901760
        %v507 = vsub.f32 %v505, %v506
        %v508 = vand.u32 %v507, 4294901760
        %509 = vmatprep.mubr.f32.mxu0 %v508
        %v510 = vand.u32 %v244, 4294901760
        %v511 = vsub.f32 %v244, %v510
        %v512 = vand.u32 %v511, 4294901760
        %v513 = vsub.f32 %v511, %v512
        %v514 = vand.u32 %v513, 4294901760
        %515 = vmatmul.mubr.f32.gmra.mrb[0].mxu0 %v514
        %v516 = vpop.f32.mrb[0].mxu0
        %v517 = vadd.f32 0.0, %v516
        %v518 = vpop.f32.mrb[0].mxu0
        %v519 = vand.u32 %v247, 4294901760
        %v520 = vsub.f32 %v247, %v519
        %v521 = vand.u32 %v520, 4294901760
        %v522 = vsub.f32 %v520, %v521
        %v523 = vand.u32 %v522, 4294901760
        %524 = vmatprep.mubr.f32.mxu0 %v523
        %v525 = vand.u32 %v246, 4294901760
        %v526 = vsub.f32 %v246, %v525
        %v527 = vand.u32 %v526, 4294901760
        %v528 = vsub.f32 %v526, %v527
        %v529 = vand.u32 %v528, 4294901760
        %530 = vmatmul.mubr.f32.gmra.mrb[0].mxu0 %v529
        %v531 = vpop.f32.mrb[0].mxu0
        %v532 = vadd.f32 0.0, %v531
        %v533 = vpop.f32.mrb[0].mxu0
        %v534 = vand.u32 %v249, 4294901760
        %v535 = vsub.f32 %v249, %v534
        %v536 = vand.u32 %v535, 4294901760
        %v537 = vsub.f32 %v535, %v536
        %v538 = vand.u32 %v537, 4294901760
        %539 = vmatprep.mubr.f32.mxu0 %v538
        %v540 = vand.u32 %v248, 4294901760
        %v541 = vsub.f32 %v248, %v540
        %v542 = vand.u32 %v541, 4294901760
        %v543 = vsub.f32 %v541, %v542
        %v544 = vand.u32 %v543, 4294901760
        %545 = vmatmul.mubr.f32.gmra.mrb[0].mxu0 %v544
        %v546 = vpop.f32.mrb[0].mxu0
        %v547 = vadd.f32 0.0, %v546
        %v548 = vpop.f32.mrb[0].mxu0
        %v549 = vand.u32 %v251, 4294901760
        %v550 = vsub.f32 %v251, %v549
        %v551 = vand.u32 %v550, 4294901760
        %v552 = vsub.f32 %v550, %v551
        %v553 = vand.u32 %v552, 4294901760
        %554 = vmatprep.mubr.f32.mxu0 %v553
        %v555 = vand.u32 %v250, 4294901760
        %v556 = vsub.f32 %v250, %v555
        %v557 = vand.u32 %v556, 4294901760
        %v558 = vsub.f32 %v556, %v557
        %v559 = vand.u32 %v558, 4294901760
        %560 = vmatmul.mubr.f32.gmra.mrb[0].mxu0 %v559
        %v561 = vpop.f32.mrb[0].mxu0
        %v562 = vadd.f32 0.0, %v561
        %v563 = vpop.f32.mrb[0].mxu0
        %v564 = vand.u32 %v285, 4294901760
        %v565 = vsub.f32 %v285, %v564
        %v566 = vand.u32 %v565, 4294901760
        %v567 = vsub.f32 %v565, %v566
        %v568 = vand.u32 %v567, 4294901760
        %569 = vmatprep.mubr.f32.mxu0 %v568
        %v570 = vand.u32 %v284, 4294901760
        %v571 = vsub.f32 %v284, %v570
        %v572 = vand.u32 %v571, 4294901760
        %v573 = vsub.f32 %v571, %v572
        %v574 = vand.u32 %v573, 4294901760
        %575 = vmatmul.mubr.f32.gmra.mrb[0].mxu0 %v574
        %v576 = vpop.f32.mrb[0].mxu0
        %v577 = vadd.f32 0.0, %v576
        %v578 = vpop.f32.mrb[0].mxu0
        %v579 = vand.u32 %v287, 4294901760
        %v580 = vsub.f32 %v287, %v579
        %v581 = vand.u32 %v580, 4294901760
        %v582 = vsub.f32 %v580, %v581
        %v583 = vand.u32 %v582, 4294901760
        %584 = vmatprep.mubr.f32.mxu0 %v583
        %v585 = vand.u32 %v286, 4294901760
        %v586 = vsub.f32 %v286, %v585
        %v587 = vand.u32 %v586, 4294901760
        %v588 = vsub.f32 %v586, %v587
        %v589 = vand.u32 %v588, 4294901760
        %590 = vmatmul.mubr.f32.gmra.mrb[0].mxu0 %v589
        %v591 = vpop.f32.mrb[0].mxu0
        %v592 = vadd.f32 0.0, %v591
        %v593 = vpop.f32.mrb[0].mxu0
        %v594 = vand.u32 %v289, 4294901760
        %v595 = vsub.f32 %v289, %v594
        %v596 = vand.u32 %v595, 4294901760
        %v597 = vsub.f32 %v595, %v596
        %v598 = vand.u32 %v597, 4294901760
        %599 = vmatprep.mubr.f32.mxu0 %v598
        %v600 = vand.u32 %v288, 4294901760
        %v601 = vsub.f32 %v288, %v600
        %v602 = vand.u32 %v601, 4294901760
        %v603 = vsub.f32 %v601, %v602
        %v604 = vand.u32 %v603, 4294901760
        %605 = vmatmul.mubr.f32.gmra.mrb[0].mxu0 %v604
        %v606 = vpop.f32.mrb[0].mxu0
        %v607 = vadd.f32 0.0, %v606
        %v608 = vpop.f32.mrb[0].mxu0
        %v609 = vand.u32 %v291, 4294901760
        %v610 = vsub.f32 %v291, %v609
        %v611 = vand.u32 %v610, 4294901760
        %v612 = vsub.f32 %v610, %v611
        %v613 = vand.u32 %v612, 4294901760
        %614 = vmatprep.mubr.f32.mxu0 %v613
        %v615 = vand.u32 %v290, 4294901760
        %v616 = vsub.f32 %v290, %v615
        %v617 = vand.u32 %v616, 4294901760
        %v618 = vsub.f32 %v616, %v617
        %v619 = vand.u32 %v618, 4294901760
        %620 = vmatmul.mubr.f32.gmra.mrb[0].mxu0 %v619
        %v621 = vpop.f32.mrb[0].mxu0
        %v622 = vadd.f32 0.0, %v621
        %v623 = vpop.f32.mrb[0].mxu0
        %624 = vdwg.mxu0
        %625 = vmatprep.subr.mxu0 0.0
        %v626 = vand.u32 %v252, 4294901760
        %v627 = vsub.f32 %v252, %v626
        %v628 = vand.u32 %v627, 4294901760
        %v629 = vsub.f32 %v627, %v628
        %v630 = vand.u32 %v629, 4294901760
        %631 = vmatpush1.msra.mxu0 %v630
        %632 = vmatprep.subr.mxu0 0.0
        %v633 = vand.u32 %v253, 4294901760
        %v634 = vsub.f32 %v253, %v633
        %v635 = vand.u32 %v634, 4294901760
        %v636 = vsub.f32 %v634, %v635
        %v637 = vand.u32 %v636, 4294901760
        %638 = vmatpush1.msra.mxu0 %v637
        %639 = vmatprep.subr.mxu0 0.0
        %v640 = vand.u32 %v254, 4294901760
        %v641 = vsub.f32 %v254, %v640
        %v642 = vand.u32 %v641, 4294901760
        %v643 = vsub.f32 %v641, %v642
        %v644 = vand.u32 %v643, 4294901760
        %645 = vmatpush1.msra.mxu0 %v644
        %646 = vmatprep.subr.mxu0 0.0
        %v647 = vand.u32 %v255, 4294901760
        %v648 = vsub.f32 %v255, %v647
        %v649 = vand.u32 %v648, 4294901760
        %v650 = vsub.f32 %v648, %v649
        %v651 = vand.u32 %v650, 4294901760
        %652 = vmatpush1.msra.mxu0 %v651
        %653 = vmatprep.subr.mxu0 0.0
        %v654 = vand.u32 %v256, 4294901760
        %v655 = vsub.f32 %v256, %v654
        %v656 = vand.u32 %v655, 4294901760
        %v657 = vsub.f32 %v655, %v656
        %v658 = vand.u32 %v657, 4294901760
        %659 = vmatpush1.msra.mxu0 %v658
        %660 = vmatprep.subr.mxu0 0.0
        %v661 = vand.u32 %v257, 4294901760
        %v662 = vsub.f32 %v257, %v661
        %v663 = vand.u32 %v662, 4294901760
        %v664 = vsub.f32 %v662, %v663
        %v665 = vand.u32 %v664, 4294901760
        %666 = vmatpush1.msra.mxu0 %v665
        %667 = vmatprep.subr.mxu0 0.0
        %v668 = vand.u32 %v258, 4294901760
        %v669 = vsub.f32 %v258, %v668
        %v670 = vand.u32 %v669, 4294901760
        %v671 = vsub.f32 %v669, %v670
        %v672 = vand.u32 %v671, 4294901760
        %673 = vmatpush1.msra.mxu0 %v672
        %674 = vmatprep.subr.mxu0 0.0
        %v675 = vand.u32 %v259, 4294901760
        %v676 = vsub.f32 %v259, %v675
        %v677 = vand.u32 %v676, 4294901760
        %v678 = vsub.f32 %v676, %v677
        %v679 = vand.u32 %v678, 4294901760
        %680 = vmatpush1.msra.mxu0 %v679
        %681 = vmatprep.subr.mxu0 0.0
        %v682 = vand.u32 %v260, 4294901760
        %v683 = vsub.f32 %v260, %v682
        %v684 = vand.u32 %v683, 4294901760
        %v685 = vsub.f32 %v683, %v684
        %v686 = vand.u32 %v685, 4294901760
        %687 = vmatpush1.msra.mxu0 %v686
        %688 = vmatprep.subr.mxu0 0.0
        %v689 = vand.u32 %v261, 4294901760
        %v690 = vsub.f32 %v261, %v689
        %v691 = vand.u32 %v690, 4294901760
        %v692 = vsub.f32 %v690, %v691
        %v693 = vand.u32 %v692, 4294901760
        %694 = vmatpush1.msra.mxu0 %v693
        %695 = vmatprep.subr.mxu0 0.0
        %v696 = vand.u32 %v262, 4294901760
        %v697 = vsub.f32 %v262, %v696
        %v698 = vand.u32 %v697, 4294901760
        %v699 = vsub.f32 %v697, %v698
        %v700 = vand.u32 %v699, 4294901760
        %701 = vmatpush1.msra.mxu0 %v700
        %702 = vmatprep.subr.mxu0 0.0
        %v703 = vand.u32 %v263, 4294901760
        %v704 = vsub.f32 %v263, %v703
        %v705 = vand.u32 %v704, 4294901760
        %v706 = vsub.f32 %v704, %v705
        %v707 = vand.u32 %v706, 4294901760
        %708 = vmatpush1.msra.mxu0 %v707
        %709 = vmatprep.subr.mxu0 0.0
        %v710 = vand.u32 %v264, 4294901760
        %v711 = vsub.f32 %v264, %v710
        %v712 = vand.u32 %v711, 4294901760
        %v713 = vsub.f32 %v711, %v712
        %v714 = vand.u32 %v713, 4294901760
        %715 = vmatpush1.msra.mxu0 %v714
        %716 = vmatprep.subr.mxu0 0.0
        %v717 = vand.u32 %v265, 4294901760
        %v718 = vsub.f32 %v265, %v717
        %v719 = vand.u32 %v718, 4294901760
        %v720 = vsub.f32 %v718, %v719
        %v721 = vand.u32 %v720, 4294901760
        %722 = vmatpush1.msra.mxu0 %v721
        %723 = vmatprep.subr.mxu0 0.0
        %v724 = vand.u32 %v266, 4294901760
        %v725 = vsub.f32 %v266, %v724
        %v726 = vand.u32 %v725, 4294901760
        %v727 = vsub.f32 %v725, %v726
        %v728 = vand.u32 %v727, 4294901760
        %729 = vmatpush1.msra.mxu0 %v728
        %730 = vmatprep.subr.mxu0 0.0
        %v731 = vand.u32 %v267, 4294901760
        %v732 = vsub.f32 %v267, %v731
        %v733 = vand.u32 %v732, 4294901760
        %v734 = vsub.f32 %v732, %v733
        %v735 = vand.u32 %v734, 4294901760
        %736 = vmatpush1.msra.mxu0 %v735
        %737 = vmatprep.subr.mxu0 0.0
        %v738 = vand.u32 %v268, 4294901760
        %v739 = vsub.f32 %v268, %v738
        %v740 = vand.u32 %v739, 4294901760
        %v741 = vsub.f32 %v739, %v740
        %v742 = vand.u32 %v741, 4294901760
        %743 = vmatpush1.msra.mxu0 %v742
        %744 = vmatprep.subr.mxu0 0.0
        %v745 = vand.u32 %v269, 4294901760
        %v746 = vsub.f32 %v269, %v745
        %v747 = vand.u32 %v746, 4294901760
        %v748 = vsub.f32 %v746, %v747
        %v749 = vand.u32 %v748, 4294901760
        %750 = vmatpush1.msra.mxu0 %v749
        %751 = vmatprep.subr.mxu0 0.0
        %v752 = vand.u32 %v270, 4294901760
        %v753 = vsub.f32 %v270, %v752
        %v754 = vand.u32 %v753, 4294901760
        %v755 = vsub.f32 %v753, %v754
        %v756 = vand.u32 %v755, 4294901760
        %757 = vmatpush1.msra.mxu0 %v756
        %758 = vmatprep.subr.mxu0 0.0
        %v759 = vand.u32 %v271, 4294901760
        %v760 = vsub.f32 %v271, %v759
        %v761 = vand.u32 %v760, 4294901760
        %v762 = vsub.f32 %v760, %v761
        %v763 = vand.u32 %v762, 4294901760
        %764 = vmatpush1.msra.mxu0 %v763
        %765 = vmatprep.subr.mxu0 0.0
        %v766 = vand.u32 %v272, 4294901760
        %v767 = vsub.f32 %v272, %v766
        %v768 = vand.u32 %v767, 4294901760
        %v769 = vsub.f32 %v767, %v768
        %v770 = vand.u32 %v769, 4294901760
        %771 = vmatpush1.msra.mxu0 %v770
        %772 = vmatprep.subr.mxu0 0.0
        %v773 = vand.u32 %v273, 4294901760
        %v774 = vsub.f32 %v273, %v773
        %v775 = vand.u32 %v774, 4294901760
        %v776 = vsub.f32 %v774, %v775
        %v777 = vand.u32 %v776, 4294901760
        %778 = vmatpush1.msra.mxu0 %v777
        %779 = vmatprep.subr.mxu0 0.0
        %v780 = vand.u32 %v274, 4294901760
        %v781 = vsub.f32 %v274, %v780
        %v782 = vand.u32 %v781, 4294901760
        %v783 = vsub.f32 %v781, %v782
        %v784 = vand.u32 %v783, 4294901760
        %785 = vmatpush1.msra.mxu0 %v784
        %786 = vmatprep.subr.mxu0 0.0
        %v787 = vand.u32 %v275, 4294901760
        %v788 = vsub.f32 %v275, %v787
        %v789 = vand.u32 %v788, 4294901760
        %v790 = vsub.f32 %v788, %v789
        %v791 = vand.u32 %v790, 4294901760
        %792 = vmatpush1.msra.mxu0 %v791
        %793 = vmatprep.subr.mxu0 0.0
        %v794 = vand.u32 %v276, 4294901760
        %v795 = vsub.f32 %v276, %v794
        %v796 = vand.u32 %v795, 4294901760
        %v797 = vsub.f32 %v795, %v796
        %v798 = vand.u32 %v797, 4294901760
        %799 = vmatpush1.msra.mxu0 %v798
        %800 = vmatprep.subr.mxu0 0.0
        %v801 = vand.u32 %v277, 4294901760
        %v802 = vsub.f32 %v277, %v801
        %v803 = vand.u32 %v802, 4294901760
        %v804 = vsub.f32 %v802, %v803
        %v805 = vand.u32 %v804, 4294901760
        %806 = vmatpush1.msra.mxu0 %v805
        %807 = vmatprep.subr.mxu0 0.0
        %v808 = vand.u32 %v278, 4294901760
        %v809 = vsub.f32 %v278, %v808
        %v810 = vand.u32 %v809, 4294901760
        %v811 = vsub.f32 %v809, %v810
        %v812 = vand.u32 %v811, 4294901760
        %813 = vmatpush1.msra.mxu0 %v812
        %814 = vmatprep.subr.mxu0 0.0
        %v815 = vand.u32 %v279, 4294901760
        %v816 = vsub.f32 %v279, %v815
        %v817 = vand.u32 %v816, 4294901760
        %v818 = vsub.f32 %v816, %v817
        %v819 = vand.u32 %v818, 4294901760
        %820 = vmatpush1.msra.mxu0 %v819
        %821 = vmatprep.subr.mxu0 0.0
        %v822 = vand.u32 %v280, 4294901760
        %v823 = vsub.f32 %v280, %v822
        %v824 = vand.u32 %v823, 4294901760
        %v825 = vsub.f32 %v823, %v824
        %v826 = vand.u32 %v825, 4294901760
        %827 = vmatpush1.msra.mxu0 %v826
        %828 = vmatprep.subr.mxu0 0.0
        %v829 = vand.u32 %v281, 4294901760
        %v830 = vsub.f32 %v281, %v829
        %v831 = vand.u32 %v830, 4294901760
        %v832 = vsub.f32 %v830, %v831
        %v833 = vand.u32 %v832, 4294901760
        %834 = vmatpush1.msra.mxu0 %v833
        %835 = vmatprep.subr.mxu0 0.0
        %v836 = vand.u32 %v282, 4294901760
        %v837 = vsub.f32 %v282, %v836
        %v838 = vand.u32 %v837, 4294901760
        %v839 = vsub.f32 %v837, %v838
        %v840 = vand.u32 %v839, 4294901760
        %841 = vmatpush1.msra.mxu0 %v840
        %842 = vmatprep.subr.mxu0 0.0
        %v843 = vand.u32 %v283, 4294901760
        %v844 = vsub.f32 %v283, %v843
        %v845 = vand.u32 %v844, 4294901760
        %v846 = vsub.f32 %v844, %v845
        %v847 = vand.u32 %v846, 4294901760
        %848 = vmatpush1.msra.mxu0 %v847
        %v849 = vand.u32 %v227, 4294901760
        %850 = vmatprep.mubr.f32.mxu0 %v849
        %v851 = vand.u32 %v226, 4294901760
        %852 = vmatmul.mubr.f32.gmra.mrb[0].mxu0 %v851
        %v853 = vpop.f32.mrb[0].mxu0
        %v854 = vadd.f32 %v457, %v853
        %v855 = vpop.f32.mrb[0].mxu0
        %v856 = vand.u32 %v229, 4294901760
        %857 = vmatprep.mubr.f32.mxu0 %v856
        %v858 = vand.u32 %v228, 4294901760
        %859 = vmatmul.mubr.f32.gmra.mrb[0].mxu0 %v858
        %v860 = vpop.f32.mrb[0].mxu0
        %v861 = vadd.f32 %v472, %v860
        %v862 = vpop.f32.mrb[0].mxu0
        %v863 = vand.u32 %v231, 4294901760
        %864 = vmatprep.mubr.f32.mxu0 %v863
        %v865 = vand.u32 %v230, 4294901760
        %866 = vmatmul.mubr.f32.gmra.mrb[0].mxu0 %v865
        %v867 = vpop.f32.mrb[0].mxu0
        %v868 = vadd.f32 %v487, %v867
        %v869 = vpop.f32.mrb[0].mxu0
        %v870 = vand.u32 %v233, 4294901760
        %871 = vmatprep.mubr.f32.mxu0 %v870
        %v872 = vand.u32 %v232, 4294901760
        %873 = vmatmul.mubr.f32.gmra.mrb[0].mxu0 %v872
        %v874 = vpop.f32.mrb[0].mxu0
        %v875 = vadd.f32 %v502, %v874
        %v876 = vpop.f32.mrb[0].mxu0
        %v877 = vand.u32 %v245, 4294901760
        %878 = vmatprep.mubr.f32.mxu0 %v877
        %v879 = vand.u32 %v244, 4294901760
        %880 = vmatmul.mubr.f32.gmra.mrb[0].mxu0 %v879
        %v881 = vpop.f32.mrb[0].mxu0
        %v882 = vadd.f32 %v517, %v881
        %v883 = vpop.f32.mrb[0].mxu0
        %v884 = vand.u32 %v247, 4294901760
        %885 = vmatprep.mubr.f32.mxu0 %v884
        %v886 = vand.u32 %v246, 4294901760
        %887 = vmatmul.mubr.f32.gmra.mrb[0].mxu0 %v886
        %v888 = vpop.f32.mrb[0].mxu0
        %v889 = vadd.f32 %v532, %v888
        %v890 = vpop.f32.mrb[0].mxu0
        %v891 = vand.u32 %v249, 4294901760
        %892 = vmatprep.mubr.f32.mxu0 %v891
        %v893 = vand.u32 %v248, 4294901760
        %894 = vmatmul.mubr.f32.gmra.mrb[0].mxu0 %v893
        %v895 = vpop.f32.mrb[0].mxu0
        %v896 = vadd.f32 %v547, %v895
        %v897 = vpop.f32.mrb[0].mxu0
        %v898 = vand.u32 %v251, 4294901760
        %899 = vmatprep.mubr.f32.mxu0 %v898
        %v900 = vand.u32 %v250, 4294901760
        %901 = vmatmul.mubr.f32.gmra.mrb[0].mxu0 %v900
        %v902 = vpop.f32.mrb[0].mxu0
        %v903 = vadd.f32 %v562, %v902
        %v904 = vpop.f32.mrb[0].mxu0
        %v905 = vand.u32 %v285, 4294901760
        %906 = vmatprep.mubr.f32.mxu0 %v905
        %v907 = vand.u32 %v284, 4294901760
        %908 = vmatmul.mubr.f32.gmra.mrb[0].mxu0 %v907
        %v909 = vpop.f32.mrb[0].mxu0
        %v910 = vadd.f32 %v577, %v909
        %v911 = vpop.f32.mrb[0].mxu0
        %v912 = vand.u32 %v287, 4294901760
        %913 = vmatprep.mubr.f32.mxu0 %v912
        %v914 = vand.u32 %v286, 4294901760
        %915 = vmatmul.mubr.f32.gmra.mrb[0].mxu0 %v914
        %v916 = vpop.f32.mrb[0].mxu0
        %v917 = vadd.f32 %v592, %v916
        %v918 = vpop.f32.mrb[0].mxu0
        %v919 = vand.u32 %v289, 4294901760
        %920 = vmatprep.mubr.f32.mxu0 %v919
        %v921 = vand.u32 %v288, 4294901760
        %922 = vmatmul.mubr.f32.gmra.mrb[0].mxu0 %v921
        %v923 = vpop.f32.mrb[0].mxu0
        %v924 = vadd.f32 %v607, %v923
        %v925 = vpop.f32.mrb[0].mxu0
        %v926 = vand.u32 %v291, 4294901760
        %927 = vmatprep.mubr.f32.mxu0 %v926
        %v928 = vand.u32 %v290, 4294901760
        %929 = vmatmul.mubr.f32.gmra.mrb[0].mxu0 %v928
        %v930 = vpop.f32.mrb[0].mxu0
        %v931 = vadd.f32 %v622, %v930
        %v932 = vpop.f32.mrb[0].mxu0
        %933 = vdwg.mxu0
        %934 = vmatprep.subr.mxu0 0.0
        %v935 = vand.u32 %v252, 4294901760
        %v936 = vsub.f32 %v252, %v935
        %937 = vmatpush1.msra.mxu0 %v936
        %938 = vmatprep.subr.mxu0 0.0
        %v939 = vand.u32 %v253, 4294901760
        %v940 = vsub.f32 %v253, %v939
        %941 = vmatpush1.msra.mxu0 %v940
        %942 = vmatprep.subr.mxu0 0.0
        %v943 = vand.u32 %v254, 4294901760
        %v944 = vsub.f32 %v254, %v943
        %945 = vmatpush1.msra.mxu0 %v944
        %946 = vmatprep.subr.mxu0 0.0
        %v947 = vand.u32 %v255, 4294901760
        %v948 = vsub.f32 %v255, %v947
        %949 = vmatpush1.msra.mxu0 %v948
        %950 = vmatprep.subr.mxu0 0.0
        %v951 = vand.u32 %v256, 4294901760
        %v952 = vsub.f32 %v256, %v951
        %953 = vmatpush1.msra.mxu0 %v952
        %954 = vmatprep.subr.mxu0 0.0
        %v955 = vand.u32 %v257, 4294901760
        %v956 = vsub.f32 %v257, %v955
        %957 = vmatpush1.msra.mxu0 %v956
        %958 = vmatprep.subr.mxu0 0.0
        %v959 = vand.u32 %v258, 4294901760
        %v960 = vsub.f32 %v258, %v959
        %961 = vmatpush1.msra.mxu0 %v960
        %962 = vmatprep.subr.mxu0 0.0
        %v963 = vand.u32 %v259, 4294901760
        %v964 = vsub.f32 %v259, %v963
        %965 = vmatpush1.msra.mxu0 %v964
        %966 = vmatprep.subr.mxu0 0.0
        %v967 = vand.u32 %v260, 4294901760
        %v968 = vsub.f32 %v260, %v967
        %969 = vmatpush1.msra.mxu0 %v968
        %970 = vmatprep.subr.mxu0 0.0
        %v971 = vand.u32 %v261, 4294901760
        %v972 = vsub.f32 %v261, %v971
        %973 = vmatpush1.msra.mxu0 %v972
        %974 = vmatprep.subr.mxu0 0.0
        %v975 = vand.u32 %v262, 4294901760
        %v976 = vsub.f32 %v262, %v975
        %977 = vmatpush1.msra.mxu0 %v976
        %978 = vmatprep.subr.mxu0 0.0
        %v979 = vand.u32 %v263, 4294901760
        %v980 = vsub.f32 %v263, %v979
        %981 = vmatpush1.msra.mxu0 %v980
        %982 = vmatprep.subr.mxu0 0.0
        %v983 = vand.u32 %v264, 4294901760
        %v984 = vsub.f32 %v264, %v983
        %985 = vmatpush1.msra.mxu0 %v984
        %986 = vmatprep.subr.mxu0 0.0
        %v987 = vand.u32 %v265, 4294901760
        %v988 = vsub.f32 %v265, %v987
        %989 = vmatpush1.msra.mxu0 %v988
        %990 = vmatprep.subr.mxu0 0.0
        %v991 = vand.u32 %v266, 4294901760
        %v992 = vsub.f32 %v266, %v991
        %993 = vmatpush1.msra.mxu0 %v992
        %994 = vmatprep.subr.mxu0 0.0
        %v995 = vand.u32 %v267, 4294901760
        %v996 = vsub.f32 %v267, %v995
        %997 = vmatpush1.msra.mxu0 %v996
        %998 = vmatprep.subr.mxu0 0.0
        %v999 = vand.u32 %v268, 4294901760
        %v1000 = vsub.f32 %v268, %v999
        %1001 = vmatpush1.msra.mxu0 %v1000
        %1002 = vmatprep.subr.mxu0 0.0
        %v1003 = vand.u32 %v269, 4294901760
        %v1004 = vsub.f32 %v269, %v1003
        %1005 = vmatpush1.msra.mxu0 %v1004
        %1006 = vmatprep.subr.mxu0 0.0
        %v1007 = vand.u32 %v270, 4294901760
        %v1008 = vsub.f32 %v270, %v1007
        %1009 = vmatpush1.msra.mxu0 %v1008
        %1010 = vmatprep.subr.mxu0 0.0
        %v1011 = vand.u32 %v271, 4294901760
        %v1012 = vsub.f32 %v271, %v1011
        %1013 = vmatpush1.msra.mxu0 %v1012
        %1014 = vmatprep.subr.mxu0 0.0
        %v1015 = vand.u32 %v272, 4294901760
        %v1016 = vsub.f32 %v272, %v1015
        %1017 = vmatpush1.msra.mxu0 %v1016
        %1018 = vmatprep.subr.mxu0 0.0
        %v1019 = vand.u32 %v273, 4294901760
        %v1020 = vsub.f32 %v273, %v1019
        %1021 = vmatpush1.msra.mxu0 %v1020
        %1022 = vmatprep.subr.mxu0 0.0
        %v1023 = vand.u32 %v274, 4294901760
        %v1024 = vsub.f32 %v274, %v1023
        %1025 = vmatpush1.msra.mxu0 %v1024
        %1026 = vmatprep.subr.mxu0 0.0
        %v1027 = vand.u32 %v275, 4294901760
        %v1028 = vsub.f32 %v275, %v1027
        %1029 = vmatpush1.msra.mxu0 %v1028
        %1030 = vmatprep.subr.mxu0 0.0
        %v1031 = vand.u32 %v276, 4294901760
        %v1032 = vsub.f32 %v276, %v1031
        %1033 = vmatpush1.msra.mxu0 %v1032
        %1034 = vmatprep.subr.mxu0 0.0
        %v1035 = vand.u32 %v277, 4294901760
        %v1036 = vsub.f32 %v277, %v1035
        %1037 = vmatpush1.msra.mxu0 %v1036
        %1038 = vmatprep.subr.mxu0 0.0
        %v1039 = vand.u32 %v278, 4294901760
        %v1040 = vsub.f32 %v278, %v1039
        %1041 = vmatpush1.msra.mxu0 %v1040
        %1042 = vmatprep.subr.mxu0 0.0
        %v1043 = vand.u32 %v279, 4294901760
        %v1044 = vsub.f32 %v279, %v1043
        %1045 = vmatpush1.msra.mxu0 %v1044
        %1046 = vmatprep.subr.mxu0 0.0
        %v1047 = vand.u32 %v280, 4294901760
        %v1048 = vsub.f32 %v280, %v1047
        %1049 = vmatpush1.msra.mxu0 %v1048
        %1050 = vmatprep.subr.mxu0 0.0
        %v1051 = vand.u32 %v281, 4294901760
        %v1052 = vsub.f32 %v281, %v1051
        %1053 = vmatpush1.msra.mxu0 %v1052
        %1054 = vmatprep.subr.mxu0 0.0
        %v1055 = vand.u32 %v282, 4294901760
        %v1056 = vsub.f32 %v282, %v1055
        %1057 = vmatpush1.msra.mxu0 %v1056
        %1058 = vmatprep.subr.mxu0 0.0
        %v1059 = vand.u32 %v283, 4294901760
        %v1060 = vsub.f32 %v283, %v1059
        %1061 = vmatpush1.msra.mxu0 %v1060
        %v1062 = vand.u32 %v227, 4294901760
        %v1063 = vsub.f32 %v227, %v1062
        %1064 = vmatprep.mubr.f32.mxu0 %v1063
        %v1065 = vand.u32 %v226, 4294901760
        %v1066 = vsub.f32 %v226, %v1065
        %1067 = vmatmul.mubr.f32.gmra.mrb[0].mxu0 %v1066
        %v1068 = vpop.f32.mrb[0].mxu0
        %v1069 = vadd.f32 %v854, %v1068
        %v1070 = vpop.f32.mrb[0].mxu0
        %v1071 = vand.u32 %v229, 4294901760
        %v1072 = vsub.f32 %v229, %v1071
        %1073 = vmatprep.mubr.f32.mxu0 %v1072
        %v1074 = vand.u32 %v228, 4294901760
        %v1075 = vsub.f32 %v228, %v1074
        %1076 = vmatmul.mubr.f32.gmra.mrb[0].mxu0 %v1075
        %v1077 = vpop.f32.mrb[0].mxu0
        %v1078 = vadd.f32 %v861, %v1077
        %v1079 = vpop.f32.mrb[0].mxu0
        %v1080 = vand.u32 %v231, 4294901760
        %v1081 = vsub.f32 %v231, %v1080
        %1082 = vmatprep.mubr.f32.mxu0 %v1081
        %v1083 = vand.u32 %v230, 4294901760
        %v1084 = vsub.f32 %v230, %v1083
        %1085 = vmatmul.mubr.f32.gmra.mrb[0].mxu0 %v1084
        %v1086 = vpop.f32.mrb[0].mxu0
        %v1087 = vadd.f32 %v868, %v1086
        %v1088 = vpop.f32.mrb[0].mxu0
        %v1089 = vand.u32 %v233, 4294901760
        %v1090 = vsub.f32 %v233, %v1089
        %1091 = vmatprep.mubr.f32.mxu0 %v1090
        %v1092 = vand.u32 %v232, 4294901760
        %v1093 = vsub.f32 %v232, %v1092
        %1094 = vmatmul.mubr.f32.gmra.mrb[0].mxu0 %v1093
        %v1095 = vpop.f32.mrb[0].mxu0
        %v1096 = vadd.f32 %v875, %v1095
        %v1097 = vpop.f32.mrb[0].mxu0
        %v1098 = vand.u32 %v245, 4294901760
        %v1099 = vsub.f32 %v245, %v1098
        %1100 = vmatprep.mubr.f32.mxu0 %v1099
        %v1101 = vand.u32 %v244, 4294901760
        %v1102 = vsub.f32 %v244, %v1101
        %1103 = vmatmul.mubr.f32.gmra.mrb[0].mxu0 %v1102
        %v1104 = vpop.f32.mrb[0].mxu0
        %v1105 = vadd.f32 %v882, %v1104
        %v1106 = vpop.f32.mrb[0].mxu0
        %v1107 = vand.u32 %v247, 4294901760
        %v1108 = vsub.f32 %v247, %v1107
        %1109 = vmatprep.mubr.f32.mxu0 %v1108
        %v1110 = vand.u32 %v246, 4294901760
        %v1111 = vsub.f32 %v246, %v1110
        %1112 = vmatmul.mubr.f32.gmra.mrb[0].mxu0 %v1111
        %v1113 = vpop.f32.mrb[0].mxu0
        %v1114 = vadd.f32 %v889, %v1113
        %v1115 = vpop.f32.mrb[0].mxu0
        %v1116 = vand.u32 %v249, 4294901760
        %v1117 = vsub.f32 %v249, %v1116
        %1118 = vmatprep.mubr.f32.mxu0 %v1117
        %v1119 = vand.u32 %v248, 4294901760
        %v1120 = vsub.f32 %v248, %v1119
        %1121 = vmatmul.mubr.f32.gmra.mrb[0].mxu0 %v1120
        %v1122 = vpop.f32.mrb[0].mxu0
        %v1123 = vadd.f32 %v896, %v1122
        %v1124 = vpop.f32.mrb[0].mxu0
        %v1125 = vand.u32 %v251, 4294901760
        %v1126 = vsub.f32 %v251, %v1125
        %1127 = vmatprep.mubr.f32.mxu0 %v1126
        %v1128 = vand.u32 %v250, 4294901760
        %v1129 = vsub.f32 %v250, %v1128
        %1130 = vmatmul.mubr.f32.gmra.mrb[0].mxu0 %v1129
        %v1131 = vpop.f32.mrb[0].mxu0
        %v1132 = vadd.f32 %v903, %v1131
        %v1133 = vpop.f32.mrb[0].mxu0
        %v1134 = vand.u32 %v285, 4294901760
        %v1135 = vsub.f32 %v285, %v1134
        %1136 = vmatprep.mubr.f32.mxu0 %v1135
        %v1137 = vand.u32 %v284, 4294901760
        %v1138 = vsub.f32 %v284, %v1137
        %1139 = vmatmul.mubr.f32.gmra.mrb[0].mxu0 %v1138
        %v1140 = vpop.f32.mrb[0].mxu0
        %v1141 = vadd.f32 %v910, %v1140
        %v1142 = vpop.f32.mrb[0].mxu0
        %v1143 = vand.u32 %v287, 4294901760
        %v1144 = vsub.f32 %v287, %v1143
        %1145 = vmatprep.mubr.f32.mxu0 %v1144
        %v1146 = vand.u32 %v286, 4294901760
        %v1147 = vsub.f32 %v286, %v1146
        %1148 = vmatmul.mubr.f32.gmra.mrb[0].mxu0 %v1147
        %v1149 = vpop.f32.mrb[0].mxu0
        %v1150 = vadd.f32 %v917, %v1149
        %v1151 = vpop.f32.mrb[0].mxu0
        %v1152 = vand.u32 %v289, 4294901760
        %v1153 = vsub.f32 %v289, %v1152
        %1154 = vmatprep.mubr.f32.mxu0 %v1153
        %v1155 = vand.u32 %v288, 4294901760
        %v1156 = vsub.f32 %v288, %v1155
        %1157 = vmatmul.mubr.f32.gmra.mrb[0].mxu0 %v1156
        %v1158 = vpop.f32.mrb[0].mxu0
        %v1159 = vadd.f32 %v924, %v1158
        %v1160 = vpop.f32.mrb[0].mxu0
        %v1161 = vand.u32 %v291, 4294901760
        %v1162 = vsub.f32 %v291, %v1161
        %1163 = vmatprep.mubr.f32.mxu0 %v1162
        %v1164 = vand.u32 %v290, 4294901760
        %v1165 = vsub.f32 %v290, %v1164
        %1166 = vmatmul.mubr.f32.gmra.mrb[0].mxu0 %v1165
        %v1167 = vpop.f32.mrb[0].mxu0
        %v1168 = vadd.f32 %v931, %v1167
        %v1169 = vpop.f32.mrb[0].mxu0
        %1170 = vdwg.mxu0
        %1171 = vmatprep.subr.mxu0 0.0
        %v1172 = vand.u32 %v252, 4294901760
        %1173 = vmatpush1.msra.mxu0 %v1172
        %1174 = vmatprep.subr.mxu0 0.0
        %v1175 = vand.u32 %v253, 4294901760
        %1176 = vmatpush1.msra.mxu0 %v1175
        %1177 = vmatprep.subr.mxu0 0.0
        %v1178 = vand.u32 %v254, 4294901760
        %1179 = vmatpush1.msra.mxu0 %v1178
        %1180 = vmatprep.subr.mxu0 0.0
        %v1181 = vand.u32 %v255, 4294901760
        %1182 = vmatpush1.msra.mxu0 %v1181
        %1183 = vmatprep.subr.mxu0 0.0
        %v1184 = vand.u32 %v256, 4294901760
        %1185 = vmatpush1.msra.mxu0 %v1184
        %1186 = vmatprep.subr.mxu0 0.0
        %v1187 = vand.u32 %v257, 4294901760
        %1188 = vmatpush1.msra.mxu0 %v1187
        %1189 = vmatprep.subr.mxu0 0.0
        %v1190 = vand.u32 %v258, 4294901760
        %1191 = vmatpush1.msra.mxu0 %v1190
        %1192 = vmatprep.subr.mxu0 0.0
        %v1193 = vand.u32 %v259, 4294901760
        %1194 = vmatpush1.msra.mxu0 %v1193
        %1195 = vmatprep.subr.mxu0 0.0
        %v1196 = vand.u32 %v260, 4294901760
        %1197 = vmatpush1.msra.mxu0 %v1196
        %1198 = vmatprep.subr.mxu0 0.0
        %v1199 = vand.u32 %v261, 4294901760
        %1200 = vmatpush1.msra.mxu0 %v1199
        %1201 = vmatprep.subr.mxu0 0.0
        %v1202 = vand.u32 %v262, 4294901760
        %1203 = vmatpush1.msra.mxu0 %v1202
        %1204 = vmatprep.subr.mxu0 0.0
        %v1205 = vand.u32 %v263, 4294901760
        %1206 = vmatpush1.msra.mxu0 %v1205
        %1207 = vmatprep.subr.mxu0 0.0
        %v1208 = vand.u32 %v264, 4294901760
        %1209 = vmatpush1.msra.mxu0 %v1208
        %1210 = vmatprep.subr.mxu0 0.0
        %v1211 = vand.u32 %v265, 4294901760
        %1212 = vmatpush1.msra.mxu0 %v1211
        %1213 = vmatprep.subr.mxu0 0.0
        %v1214 = vand.u32 %v266, 4294901760
        %1215 = vmatpush1.msra.mxu0 %v1214
        %1216 = vmatprep.subr.mxu0 0.0
        %v1217 = vand.u32 %v267, 4294901760
        %1218 = vmatpush1.msra.mxu0 %v1217
        %1219 = vmatprep.subr.mxu0 0.0
        %v1220 = vand.u32 %v268, 4294901760
        %1221 = vmatpush1.msra.mxu0 %v1220
        %1222 = vmatprep.subr.mxu0 0.0
        %v1223 = vand.u32 %v269, 4294901760
        %1224 = vmatpush1.msra.mxu0 %v1223
        %1225 = vmatprep.subr.mxu0 0.0
        %v1226 = vand.u32 %v270, 4294901760
        %1227 = vmatpush1.msra.mxu0 %v1226
        %1228 = vmatprep.subr.mxu0 0.0
        %v1229 = vand.u32 %v271, 4294901760
        %1230 = vmatpush1.msra.mxu0 %v1229
        %1231 = vmatprep.subr.mxu0 0.0
        %v1232 = vand.u32 %v272, 4294901760
        %1233 = vmatpush1.msra.mxu0 %v1232
        %1234 = vmatprep.subr.mxu0 0.0
        %v1235 = vand.u32 %v273, 4294901760
        %1236 = vmatpush1.msra.mxu0 %v1235
        %1237 = vmatprep.subr.mxu0 0.0
        %v1238 = vand.u32 %v274, 4294901760
        %1239 = vmatpush1.msra.mxu0 %v1238
        %1240 = vmatprep.subr.mxu0 0.0
        %v1241 = vand.u32 %v275, 4294901760
        %1242 = vmatpush1.msra.mxu0 %v1241
        %1243 = vmatprep.subr.mxu0 0.0
        %v1244 = vand.u32 %v276, 4294901760
        %1245 = vmatpush1.msra.mxu0 %v1244
        %1246 = vmatprep.subr.mxu0 0.0
        %v1247 = vand.u32 %v277, 4294901760
        %1248 = vmatpush1.msra.mxu0 %v1247
        %1249 = vmatprep.subr.mxu0 0.0
        %v1250 = vand.u32 %v278, 4294901760
        %1251 = vmatpush1.msra.mxu0 %v1250
        %1252 = vmatprep.subr.mxu0 0.0
        %v1253 = vand.u32 %v279, 4294901760
        %1254 = vmatpush1.msra.mxu0 %v1253
        %1255 = vmatprep.subr.mxu0 0.0
        %v1256 = vand.u32 %v280, 4294901760
        %1257 = vmatpush1.msra.mxu0 %v1256
        %1258 = vmatprep.subr.mxu0 0.0
        %v1259 = vand.u32 %v281, 4294901760
        %1260 = vmatpush1.msra.mxu0 %v1259
        %1261 = vmatprep.subr.mxu0 0.0
        %v1262 = vand.u32 %v282, 4294901760
        %1263 = vmatpush1.msra.mxu0 %v1262
        %1264 = vmatprep.subr.mxu0 0.0
        %v1265 = vand.u32 %v283, 4294901760
        %1266 = vmatpush1.msra.mxu0 %v1265
        %v1267 = vand.u32 %v227, 4294901760
        %v1268 = vsub.f32 %v227, %v1267
        %v1269 = vand.u32 %v1268, 4294901760
        %1270 = vmatprep.mubr.f32.mxu0 %v1269
        %v1271 = vand.u32 %v226, 4294901760
        %v1272 = vsub.f32 %v226, %v1271
        %v1273 = vand.u32 %v1272, 4294901760
        %1274 = vmatmul.mubr.f32.gmra.mrb[0].mxu0 %v1273
        %v1275 = vpop.f32.mrb[0].mxu0
        %v1276 = vadd.f32 %v1069, %v1275
        %v1277 = vpop.f32.mrb[0].mxu0
        %v1278 = vand.u32 %v229, 4294901760
        %v1279 = vsub.f32 %v229, %v1278
        %v1280 = vand.u32 %v1279, 4294901760
        %1281 = vmatprep.mubr.f32.mxu0 %v1280
        %v1282 = vand.u32 %v228, 4294901760
        %v1283 = vsub.f32 %v228, %v1282
        %v1284 = vand.u32 %v1283, 4294901760
        %1285 = vmatmul.mubr.f32.gmra.mrb[0].mxu0 %v1284
        %v1286 = vpop.f32.mrb[0].mxu0
        %v1287 = vadd.f32 %v1078, %v1286
        %v1288 = vpop.f32.mrb[0].mxu0
        %v1289 = vand.u32 %v231, 4294901760
        %v1290 = vsub.f32 %v231, %v1289
        %v1291 = vand.u32 %v1290, 4294901760
        %1292 = vmatprep.mubr.f32.mxu0 %v1291
        %v1293 = vand.u32 %v230, 4294901760
        %v1294 = vsub.f32 %v230, %v1293
        %v1295 = vand.u32 %v1294, 4294901760
        %1296 = vmatmul.mubr.f32.gmra.mrb[0].mxu0 %v1295
        %v1297 = vpop.f32.mrb[0].mxu0
        %v1298 = vadd.f32 %v1087, %v1297
        %v1299 = vpop.f32.mrb[0].mxu0
        %v1300 = vand.u32 %v233, 4294901760
        %v1301 = vsub.f32 %v233, %v1300
        %v1302 = vand.u32 %v1301, 4294901760
        %1303 = vmatprep.mubr.f32.mxu0 %v1302
        %v1304 = vand.u32 %v232, 4294901760
        %v1305 = vsub.f32 %v232, %v1304
        %v1306 = vand.u32 %v1305, 4294901760
        %1307 = vmatmul.mubr.f32.gmra.mrb[0].mxu0 %v1306
        %v1308 = vpop.f32.mrb[0].mxu0
        %v1309 = vadd.f32 %v1096, %v1308
        %v1310 = vpop.f32.mrb[0].mxu0
        %v1311 = vand.u32 %v245, 4294901760
        %v1312 = vsub.f32 %v245, %v1311
        %v1313 = vand.u32 %v1312, 4294901760
        %1314 = vmatprep.mubr.f32.mxu0 %v1313
        %v1315 = vand.u32 %v244, 4294901760
        %v1316 = vsub.f32 %v244, %v1315
        %v1317 = vand.u32 %v1316, 4294901760
        %1318 = vmatmul.mubr.f32.gmra.mrb[0].mxu0 %v1317
        %v1319 = vpop.f32.mrb[0].mxu0
        %v1320 = vadd.f32 %v1105, %v1319
        %v1321 = vpop.f32.mrb[0].mxu0
        %v1322 = vand.u32 %v247, 4294901760
        %v1323 = vsub.f32 %v247, %v1322
        %v1324 = vand.u32 %v1323, 4294901760
        %1325 = vmatprep.mubr.f32.mxu0 %v1324
        %v1326 = vand.u32 %v246, 4294901760
        %v1327 = vsub.f32 %v246, %v1326
        %v1328 = vand.u32 %v1327, 4294901760
        %1329 = vmatmul.mubr.f32.gmra.mrb[0].mxu0 %v1328
        %v1330 = vpop.f32.mrb[0].mxu0
        %v1331 = vadd.f32 %v1114, %v1330
        %v1332 = vpop.f32.mrb[0].mxu0
        %v1333 = vand.u32 %v249, 4294901760
        %v1334 = vsub.f32 %v249, %v1333
        %v1335 = vand.u32 %v1334, 4294901760
        %1336 = vmatprep.mubr.f32.mxu0 %v1335
        %v1337 = vand.u32 %v248, 4294901760
        %v1338 = vsub.f32 %v248, %v1337
        %v1339 = vand.u32 %v1338, 4294901760
        %1340 = vmatmul.mubr.f32.gmra.mrb[0].mxu0 %v1339
        %v1341 = vpop.f32.mrb[0].mxu0
        %v1342 = vadd.f32 %v1123, %v1341
        %v1343 = vpop.f32.mrb[0].mxu0
        %v1344 = vand.u32 %v251, 4294901760
        %v1345 = vsub.f32 %v251, %v1344
        %v1346 = vand.u32 %v1345, 4294901760
        %1347 = vmatprep.mubr.f32.mxu0 %v1346
        %v1348 = vand.u32 %v250, 4294901760
        %v1349 = vsub.f32 %v250, %v1348
        %v1350 = vand.u32 %v1349, 4294901760
        %1351 = vmatmul.mubr.f32.gmra.mrb[0].mxu0 %v1350
        %v1352 = vpop.f32.mrb[0].mxu0
        %v1353 = vadd.f32 %v1132, %v1352
        %v1354 = vpop.f32.mrb[0].mxu0
        %v1355 = vand.u32 %v285, 4294901760
        %v1356 = vsub.f32 %v285, %v1355
        %v1357 = vand.u32 %v1356, 4294901760
        %1358 = vmatprep.mubr.f32.mxu0 %v1357
        %v1359 = vand.u32 %v284, 4294901760
        %v1360 = vsub.f32 %v284, %v1359
        %v1361 = vand.u32 %v1360, 4294901760
        %1362 = vmatmul.mubr.f32.gmra.mrb[0].mxu0 %v1361
        %v1363 = vpop.f32.mrb[0].mxu0
        %v1364 = vadd.f32 %v1141, %v1363
        %v1365 = vpop.f32.mrb[0].mxu0
        %v1366 = vand.u32 %v287, 4294901760
        %v1367 = vsub.f32 %v287, %v1366
        %v1368 = vand.u32 %v1367, 4294901760
        %1369 = vmatprep.mubr.f32.mxu0 %v1368
        %v1370 = vand.u32 %v286, 4294901760
        %v1371 = vsub.f32 %v286, %v1370
        %v1372 = vand.u32 %v1371, 4294901760
        %1373 = vmatmul.mubr.f32.gmra.mrb[0].mxu0 %v1372
        %v1374 = vpop.f32.mrb[0].mxu0
        %v1375 = vadd.f32 %v1150, %v1374
        %v1376 = vpop.f32.mrb[0].mxu0
        %v1377 = vand.u32 %v289, 4294901760
        %v1378 = vsub.f32 %v289, %v1377
        %v1379 = vand.u32 %v1378, 4294901760
        %1380 = vmatprep.mubr.f32.mxu0 %v1379
        %v1381 = vand.u32 %v288, 4294901760
        %v1382 = vsub.f32 %v288, %v1381
        %v1383 = vand.u32 %v1382, 4294901760
        %1384 = vmatmul.mubr.f32.gmra.mrb[0].mxu0 %v1383
        %v1385 = vpop.f32.mrb[0].mxu0
        %v1386 = vadd.f32 %v1159, %v1385
        %v1387 = vpop.f32.mrb[0].mxu0
        %v1388 = vand.u32 %v291, 4294901760
        %v1389 = vsub.f32 %v291, %v1388
        %v1390 = vand.u32 %v1389, 4294901760
        %1391 = vmatprep.mubr.f32.mxu0 %v1390
        %v1392 = vand.u32 %v290, 4294901760
        %v1393 = vsub.f32 %v290, %v1392
        %v1394 = vand.u32 %v1393, 4294901760
        %1395 = vmatmul.mubr.f32.gmra.mrb[0].mxu0 %v1394
        %v1396 = vpop.f32.mrb[0].mxu0
        %v1397 = vadd.f32 %v1168, %v1396
        %v1398 = vpop.f32.mrb[0].mxu0
        %1399 = vdwg.mxu0
        %1400 = vmatprep.subr.mxu0 0.0
        %v1401 = vand.u32 %v252, 4294901760
        %v1402 = vsub.f32 %v252, %v1401
        %v1403 = vand.u32 %v1402, 4294901760
        %1404 = vmatpush1.msra.mxu0 %v1403
        %1405 = vmatprep.subr.mxu0 0.0
        %v1406 = vand.u32 %v253, 4294901760
        %v1407 = vsub.f32 %v253, %v1406
        %v1408 = vand.u32 %v1407, 4294901760
        %1409 = vmatpush1.msra.mxu0 %v1408
        %1410 = vmatprep.subr.mxu0 0.0
        %v1411 = vand.u32 %v254, 4294901760
        %v1412 = vsub.f32 %v254, %v1411
        %v1413 = vand.u32 %v1412, 4294901760
        %1414 = vmatpush1.msra.mxu0 %v1413
        %1415 = vmatprep.subr.mxu0 0.0
        %v1416 = vand.u32 %v255, 4294901760
        %v1417 = vsub.f32 %v255, %v1416
        %v1418 = vand.u32 %v1417, 4294901760
        %1419 = vmatpush1.msra.mxu0 %v1418
        %1420 = vmatprep.subr.mxu0 0.0
        %v1421 = vand.u32 %v256, 4294901760
        %v1422 = vsub.f32 %v256, %v1421
        %v1423 = vand.u32 %v1422, 4294901760
        %1424 = vmatpush1.msra.mxu0 %v1423
        %1425 = vmatprep.subr.mxu0 0.0
        %v1426 = vand.u32 %v257, 4294901760
        %v1427 = vsub.f32 %v257, %v1426
        %v1428 = vand.u32 %v1427, 4294901760
        %1429 = vmatpush1.msra.mxu0 %v1428
        %1430 = vmatprep.subr.mxu0 0.0
        %v1431 = vand.u32 %v258, 4294901760
        %v1432 = vsub.f32 %v258, %v1431
        %v1433 = vand.u32 %v1432, 4294901760
        %1434 = vmatpush1.msra.mxu0 %v1433
        %1435 = vmatprep.subr.mxu0 0.0
        %v1436 = vand.u32 %v259, 4294901760
        %v1437 = vsub.f32 %v259, %v1436
        %v1438 = vand.u32 %v1437, 4294901760
        %1439 = vmatpush1.msra.mxu0 %v1438
        %1440 = vmatprep.subr.mxu0 0.0
        %v1441 = vand.u32 %v260, 4294901760
        %v1442 = vsub.f32 %v260, %v1441
        %v1443 = vand.u32 %v1442, 4294901760
        %1444 = vmatpush1.msra.mxu0 %v1443
        %1445 = vmatprep.subr.mxu0 0.0
        %v1446 = vand.u32 %v261, 4294901760
        %v1447 = vsub.f32 %v261, %v1446
        %v1448 = vand.u32 %v1447, 4294901760
        %1449 = vmatpush1.msra.mxu0 %v1448
        %1450 = vmatprep.subr.mxu0 0.0
        %v1451 = vand.u32 %v262, 4294901760
        %v1452 = vsub.f32 %v262, %v1451
        %v1453 = vand.u32 %v1452, 4294901760
        %1454 = vmatpush1.msra.mxu0 %v1453
        %1455 = vmatprep.subr.mxu0 0.0
        %v1456 = vand.u32 %v263, 4294901760
        %v1457 = vsub.f32 %v263, %v1456
        %v1458 = vand.u32 %v1457, 4294901760
        %1459 = vmatpush1.msra.mxu0 %v1458
        %1460 = vmatprep.subr.mxu0 0.0
        %v1461 = vand.u32 %v264, 4294901760
        %v1462 = vsub.f32 %v264, %v1461
        %v1463 = vand.u32 %v1462, 4294901760
        %1464 = vmatpush1.msra.mxu0 %v1463
        %1465 = vmatprep.subr.mxu0 0.0
        %v1466 = vand.u32 %v265, 4294901760
        %v1467 = vsub.f32 %v265, %v1466
        %v1468 = vand.u32 %v1467, 4294901760
        %1469 = vmatpush1.msra.mxu0 %v1468
        %1470 = vmatprep.subr.mxu0 0.0
        %v1471 = vand.u32 %v266, 4294901760
        %v1472 = vsub.f32 %v266, %v1471
        %v1473 = vand.u32 %v1472, 4294901760
        %1474 = vmatpush1.msra.mxu0 %v1473
        %1475 = vmatprep.subr.mxu0 0.0
        %v1476 = vand.u32 %v267, 4294901760
        %v1477 = vsub.f32 %v267, %v1476
        %v1478 = vand.u32 %v1477, 4294901760
        %1479 = vmatpush1.msra.mxu0 %v1478
        %1480 = vmatprep.subr.mxu0 0.0
        %v1481 = vand.u32 %v268, 4294901760
        %v1482 = vsub.f32 %v268, %v1481
        %v1483 = vand.u32 %v1482, 4294901760
        %1484 = vmatpush1.msra.mxu0 %v1483
        %1485 = vmatprep.subr.mxu0 0.0
        %v1486 = vand.u32 %v269, 4294901760
        %v1487 = vsub.f32 %v269, %v1486
        %v1488 = vand.u32 %v1487, 4294901760
        %1489 = vmatpush1.msra.mxu0 %v1488
        %1490 = vmatprep.subr.mxu0 0.0
        %v1491 = vand.u32 %v270, 4294901760
        %v1492 = vsub.f32 %v270, %v1491
        %v1493 = vand.u32 %v1492, 4294901760
        %1494 = vmatpush1.msra.mxu0 %v1493
        %1495 = vmatprep.subr.mxu0 0.0
        %v1496 = vand.u32 %v271, 4294901760
        %v1497 = vsub.f32 %v271, %v1496
        %v1498 = vand.u32 %v1497, 4294901760
        %1499 = vmatpush1.msra.mxu0 %v1498
        %1500 = vmatprep.subr.mxu0 0.0
        %v1501 = vand.u32 %v272, 4294901760
        %v1502 = vsub.f32 %v272, %v1501
        %v1503 = vand.u32 %v1502, 4294901760
        %1504 = vmatpush1.msra.mxu0 %v1503
        %1505 = vmatprep.subr.mxu0 0.0
        %v1506 = vand.u32 %v273, 4294901760
        %v1507 = vsub.f32 %v273, %v1506
        %v1508 = vand.u32 %v1507, 4294901760
        %1509 = vmatpush1.msra.mxu0 %v1508
        %1510 = vmatprep.subr.mxu0 0.0
        %v1511 = vand.u32 %v274, 4294901760
        %v1512 = vsub.f32 %v274, %v1511
        %v1513 = vand.u32 %v1512, 4294901760
        %1514 = vmatpush1.msra.mxu0 %v1513
        %1515 = vmatprep.subr.mxu0 0.0
        %v1516 = vand.u32 %v275, 4294901760
        %v1517 = vsub.f32 %v275, %v1516
        %v1518 = vand.u32 %v1517, 4294901760
        %1519 = vmatpush1.msra.mxu0 %v1518
        %1520 = vmatprep.subr.mxu0 0.0
        %v1521 = vand.u32 %v276, 4294901760
        %v1522 = vsub.f32 %v276, %v1521
        %v1523 = vand.u32 %v1522, 4294901760
        %1524 = vmatpush1.msra.mxu0 %v1523
        %1525 = vmatprep.subr.mxu0 0.0
        %v1526 = vand.u32 %v277, 4294901760
        %v1527 = vsub.f32 %v277, %v1526
        %v1528 = vand.u32 %v1527, 4294901760
        %1529 = vmatpush1.msra.mxu0 %v1528
        %1530 = vmatprep.subr.mxu0 0.0
        %v1531 = vand.u32 %v278, 4294901760
        %v1532 = vsub.f32 %v278, %v1531
        %v1533 = vand.u32 %v1532, 4294901760
        %1534 = vmatpush1.msra.mxu0 %v1533
        %1535 = vmatprep.subr.mxu0 0.0
        %v1536 = vand.u32 %v279, 4294901760
        %v1537 = vsub.f32 %v279, %v1536
        %v1538 = vand.u32 %v1537, 4294901760
        %1539 = vmatpush1.msra.mxu0 %v1538
        %1540 = vmatprep.subr.mxu0 0.0
        %v1541 = vand.u32 %v280, 4294901760
        %v1542 = vsub.f32 %v280, %v1541
        %v1543 = vand.u32 %v1542, 4294901760
        %1544 = vmatpush1.msra.mxu0 %v1543
        %1545 = vmatprep.subr.mxu0 0.0
        %v1546 = vand.u32 %v281, 4294901760
        %v1547 = vsub.f32 %v281, %v1546
        %v1548 = vand.u32 %v1547, 4294901760
        %1549 = vmatpush1.msra.mxu0 %v1548
        %1550 = vmatprep.subr.mxu0 0.0
        %v1551 = vand.u32 %v282, 4294901760
        %v1552 = vsub.f32 %v282, %v1551
        %v1553 = vand.u32 %v1552, 4294901760
        %1554 = vmatpush1.msra.mxu0 %v1553
        %1555 = vmatprep.subr.mxu0 0.0
        %v1556 = vand.u32 %v283, 4294901760
        %v1557 = vsub.f32 %v283, %v1556
        %v1558 = vand.u32 %v1557, 4294901760
        %1559 = vmatpush1.msra.mxu0 %v1558
        %v1560 = vand.u32 %v227, 4294901760
        %1561 = vmatprep.mubr.f32.mxu0 %v1560
        %v1562 = vand.u32 %v226, 4294901760
        %1563 = vmatmul.mubr.f32.gmra.mrb[0].mxu0 %v1562
        %v1564 = vpop.f32.mrb[0].mxu0
        %v1565 = vadd.f32 %v1276, %v1564
        %v1566 = vpop.f32.mrb[0].mxu0
        %v1567 = vand.u32 %v229, 4294901760
        %1568 = vmatprep.mubr.f32.mxu0 %v1567
        %v1569 = vand.u32 %v228, 4294901760
        %1570 = vmatmul.mubr.f32.gmra.mrb[0].mxu0 %v1569
        %v1571 = vpop.f32.mrb[0].mxu0
        %v1572 = vadd.f32 %v1287, %v1571
        %v1573 = vpop.f32.mrb[0].mxu0
        %v1574 = vand.u32 %v231, 4294901760
        %1575 = vmatprep.mubr.f32.mxu0 %v1574
        %v1576 = vand.u32 %v230, 4294901760
        %1577 = vmatmul.mubr.f32.gmra.mrb[0].mxu0 %v1576
        %v1578 = vpop.f32.mrb[0].mxu0
        %v1579 = vadd.f32 %v1298, %v1578
        %v1580 = vpop.f32.mrb[0].mxu0
        %v1581 = vand.u32 %v233, 4294901760
        %1582 = vmatprep.mubr.f32.mxu0 %v1581
        %v1583 = vand.u32 %v232, 4294901760
        %1584 = vmatmul.mubr.f32.gmra.mrb[0].mxu0 %v1583
        %v1585 = vpop.f32.mrb[0].mxu0
        %v1586 = vadd.f32 %v1309, %v1585
        %v1587 = vpop.f32.mrb[0].mxu0
        %v1588 = vand.u32 %v245, 4294901760
        %1589 = vmatprep.mubr.f32.mxu0 %v1588
        %v1590 = vand.u32 %v244, 4294901760
        %1591 = vmatmul.mubr.f32.gmra.mrb[0].mxu0 %v1590
        %v1592 = vpop.f32.mrb[0].mxu0
        %v1593 = vadd.f32 %v1320, %v1592
        %v1594 = vpop.f32.mrb[0].mxu0
        %v1595 = vand.u32 %v247, 4294901760
        %1596 = vmatprep.mubr.f32.mxu0 %v1595
        %v1597 = vand.u32 %v246, 4294901760
        %1598 = vmatmul.mubr.f32.gmra.mrb[0].mxu0 %v1597
        %v1599 = vpop.f32.mrb[0].mxu0
        %v1600 = vadd.f32 %v1331, %v1599
        %v1601 = vpop.f32.mrb[0].mxu0
        %v1602 = vand.u32 %v249, 4294901760
        %1603 = vmatprep.mubr.f32.mxu0 %v1602
        %v1604 = vand.u32 %v248, 4294901760
        %1605 = vmatmul.mubr.f32.gmra.mrb[0].mxu0 %v1604
        %v1606 = vpop.f32.mrb[0].mxu0
        %v1607 = vadd.f32 %v1342, %v1606
        %v1608 = vpop.f32.mrb[0].mxu0
        %v1609 = vand.u32 %v251, 4294901760
        %1610 = vmatprep.mubr.f32.mxu0 %v1609
        %v1611 = vand.u32 %v250, 4294901760
        %1612 = vmatmul.mubr.f32.gmra.mrb[0].mxu0 %v1611
        %v1613 = vpop.f32.mrb[0].mxu0
        %v1614 = vadd.f32 %v1353, %v1613
        %v1615 = vpop.f32.mrb[0].mxu0
        %v1616 = vand.u32 %v285, 4294901760
        %1617 = vmatprep.mubr.f32.mxu0 %v1616
        %v1618 = vand.u32 %v284, 4294901760
        %1619 = vmatmul.mubr.f32.gmra.mrb[0].mxu0 %v1618
        %v1620 = vpop.f32.mrb[0].mxu0
        %v1621 = vadd.f32 %v1364, %v1620
        %v1622 = vpop.f32.mrb[0].mxu0
        %v1623 = vand.u32 %v287, 4294901760
        %1624 = vmatprep.mubr.f32.mxu0 %v1623
        %v1625 = vand.u32 %v286, 4294901760
        %1626 = vmatmul.mubr.f32.gmra.mrb[0].mxu0 %v1625
        %v1627 = vpop.f32.mrb[0].mxu0
        %v1628 = vadd.f32 %v1375, %v1627
        %v1629 = vpop.f32.mrb[0].mxu0
        %v1630 = vand.u32 %v289, 4294901760
        %1631 = vmatprep.mubr.f32.mxu0 %v1630
        %v1632 = vand.u32 %v288, 4294901760
        %1633 = vmatmul.mubr.f32.gmra.mrb[0].mxu0 %v1632
        %v1634 = vpop.f32.mrb[0].mxu0
        %v1635 = vadd.f32 %v1386, %v1634
        %v1636 = vpop.f32.mrb[0].mxu0
        %v1637 = vand.u32 %v291, 4294901760
        %1638 = vmatprep.mubr.f32.mxu0 %v1637
        %v1639 = vand.u32 %v290, 4294901760
        %1640 = vmatmul.mubr.f32.gmra.mrb[0].mxu0 %v1639
        %v1641 = vpop.f32.mrb[0].mxu0
        %v1642 = vadd.f32 %v1397, %v1641
        %v1643 = vpop.f32.mrb[0].mxu0
        %1644 = vdwg.mxu0
        %1645 = vmatprep.subr.mxu0 0.0
        %v1646 = vand.u32 %v252, 4294901760
        %1647 = vmatpush1.msra.mxu0 %v1646
        %1648 = vmatprep.subr.mxu0 0.0
        %v1649 = vand.u32 %v253, 4294901760
        %1650 = vmatpush1.msra.mxu0 %v1649
        %1651 = vmatprep.subr.mxu0 0.0
        %v1652 = vand.u32 %v254, 4294901760
        %1653 = vmatpush1.msra.mxu0 %v1652
        %1654 = vmatprep.subr.mxu0 0.0
        %v1655 = vand.u32 %v255, 4294901760
        %1656 = vmatpush1.msra.mxu0 %v1655
        %1657 = vmatprep.subr.mxu0 0.0
        %v1658 = vand.u32 %v256, 4294901760
        %1659 = vmatpush1.msra.mxu0 %v1658
        %1660 = vmatprep.subr.mxu0 0.0
        %v1661 = vand.u32 %v257, 4294901760
        %1662 = vmatpush1.msra.mxu0 %v1661
        %1663 = vmatprep.subr.mxu0 0.0
        %v1664 = vand.u32 %v258, 4294901760
        %1665 = vmatpush1.msra.mxu0 %v1664
        %1666 = vmatprep.subr.mxu0 0.0
        %v1667 = vand.u32 %v259, 4294901760
        %1668 = vmatpush1.msra.mxu0 %v1667
        %1669 = vmatprep.subr.mxu0 0.0
        %v1670 = vand.u32 %v260, 4294901760
        %1671 = vmatpush1.msra.mxu0 %v1670
        %1672 = vmatprep.subr.mxu0 0.0
        %v1673 = vand.u32 %v261, 4294901760
        %1674 = vmatpush1.msra.mxu0 %v1673
        %1675 = vmatprep.subr.mxu0 0.0
        %v1676 = vand.u32 %v262, 4294901760
        %1677 = vmatpush1.msra.mxu0 %v1676
        %1678 = vmatprep.subr.mxu0 0.0
        %v1679 = vand.u32 %v263, 4294901760
        %1680 = vmatpush1.msra.mxu0 %v1679
        %1681 = vmatprep.subr.mxu0 0.0
        %v1682 = vand.u32 %v264, 4294901760
        %1683 = vmatpush1.msra.mxu0 %v1682
        %1684 = vmatprep.subr.mxu0 0.0
        %v1685 = vand.u32 %v265, 4294901760
        %1686 = vmatpush1.msra.mxu0 %v1685
        %1687 = vmatprep.subr.mxu0 0.0
        %v1688 = vand.u32 %v266, 4294901760
        %1689 = vmatpush1.msra.mxu0 %v1688
        %1690 = vmatprep.subr.mxu0 0.0
        %v1691 = vand.u32 %v267, 4294901760
        %1692 = vmatpush1.msra.mxu0 %v1691
        %1693 = vmatprep.subr.mxu0 0.0
        %v1694 = vand.u32 %v268, 4294901760
        %1695 = vmatpush1.msra.mxu0 %v1694
        %1696 = vmatprep.subr.mxu0 0.0
        %v1697 = vand.u32 %v269, 4294901760
        %1698 = vmatpush1.msra.mxu0 %v1697
        %1699 = vmatprep.subr.mxu0 0.0
        %v1700 = vand.u32 %v270, 4294901760
        %1701 = vmatpush1.msra.mxu0 %v1700
        %1702 = vmatprep.subr.mxu0 0.0
        %v1703 = vand.u32 %v271, 4294901760
        %1704 = vmatpush1.msra.mxu0 %v1703
        %1705 = vmatprep.subr.mxu0 0.0
        %v1706 = vand.u32 %v272, 4294901760
        %1707 = vmatpush1.msra.mxu0 %v1706
        %1708 = vmatprep.subr.mxu0 0.0
        %v1709 = vand.u32 %v273, 4294901760
        %1710 = vmatpush1.msra.mxu0 %v1709
        %1711 = vmatprep.subr.mxu0 0.0
        %v1712 = vand.u32 %v274, 4294901760
        %1713 = vmatpush1.msra.mxu0 %v1712
        %1714 = vmatprep.subr.mxu0 0.0
        %v1715 = vand.u32 %v275, 4294901760
        %1716 = vmatpush1.msra.mxu0 %v1715
        %1717 = vmatprep.subr.mxu0 0.0
        %v1718 = vand.u32 %v276, 4294901760
        %1719 = vmatpush1.msra.mxu0 %v1718
        %1720 = vmatprep.subr.mxu0 0.0
        %v1721 = vand.u32 %v277, 4294901760
        %1722 = vmatpush1.msra.mxu0 %v1721
        %1723 = vmatprep.subr.mxu0 0.0
        %v1724 = vand.u32 %v278, 4294901760
        %1725 = vmatpush1.msra.mxu0 %v1724
        %1726 = vmatprep.subr.mxu0 0.0
        %v1727 = vand.u32 %v279, 4294901760
        %1728 = vmatpush1.msra.mxu0 %v1727
        %1729 = vmatprep.subr.mxu0 0.0
        %v1730 = vand.u32 %v280, 4294901760
        %1731 = vmatpush1.msra.mxu0 %v1730
        %1732 = vmatprep.subr.mxu0 0.0
        %v1733 = vand.u32 %v281, 4294901760
        %1734 = vmatpush1.msra.mxu0 %v1733
        %1735 = vmatprep.subr.mxu0 0.0
        %v1736 = vand.u32 %v282, 4294901760
        %1737 = vmatpush1.msra.mxu0 %v1736
        %1738 = vmatprep.subr.mxu0 0.0
        %v1739 = vand.u32 %v283, 4294901760
        %1740 = vmatpush1.msra.mxu0 %v1739
        %v1741 = vand.u32 %v227, 4294901760
        %1742 = vmatprep.mubr.f32.mxu0 %v1741
        %v1743 = vand.u32 %v226, 4294901760
        %1744 = vmatmul.mubr.f32.gmra.mrb[0].mxu0 %v1743
        %v1745 = vpop.f32.mrb[0].mxu0
        %v1746 = vadd.f32 %v1565, %v1745
        %v1747 = vpop.f32.mrb[0].mxu0
        %v1748 = vand.u32 %v229, 4294901760
        %1749 = vmatprep.mubr.f32.mxu0 %v1748
        %v1750 = vand.u32 %v228, 4294901760
        %1751 = vmatmul.mubr.f32.gmra.mrb[0].mxu0 %v1750
        %v1752 = vpop.f32.mrb[0].mxu0
        %v1753 = vadd.f32 %v1572, %v1752
        %v1754 = vpop.f32.mrb[0].mxu0
        %v1755 = vand.u32 %v231, 4294901760
        %1756 = vmatprep.mubr.f32.mxu0 %v1755
        %v1757 = vand.u32 %v230, 4294901760
        %1758 = vmatmul.mubr.f32.gmra.mrb[0].mxu0 %v1757
        %v1759 = vpop.f32.mrb[0].mxu0
        %v1760 = vadd.f32 %v1579, %v1759
        %v1761 = vpop.f32.mrb[0].mxu0
        %v1762 = vand.u32 %v233, 4294901760
        %1763 = vmatprep.mubr.f32.mxu0 %v1762
        %v1764 = vand.u32 %v232, 4294901760
        %1765 = vmatmul.mubr.f32.gmra.mrb[0].mxu0 %v1764
        %v1766 = vpop.f32.mrb[0].mxu0
        %v1767 = vadd.f32 %v1586, %v1766
        %v1768 = vpop.f32.mrb[0].mxu0
        %v1769 = vand.u32 %v245, 4294901760
        %1770 = vmatprep.mubr.f32.mxu0 %v1769
        %v1771 = vand.u32 %v244, 4294901760
        %1772 = vmatmul.mubr.f32.gmra.mrb[0].mxu0 %v1771
        %v1773 = vpop.f32.mrb[0].mxu0
        %v1774 = vadd.f32 %v1593, %v1773
        %v1775 = vpop.f32.mrb[0].mxu0
        %v1776 = vand.u32 %v247, 4294901760
        %1777 = vmatprep.mubr.f32.mxu0 %v1776
        %v1778 = vand.u32 %v246, 4294901760
        %1779 = vmatmul.mubr.f32.gmra.mrb[0].mxu0 %v1778
        %v1780 = vpop.f32.mrb[0].mxu0
        %v1781 = vadd.f32 %v1600, %v1780
        %v1782 = vpop.f32.mrb[0].mxu0
        %v1783 = vand.u32 %v249, 4294901760
        %1784 = vmatprep.mubr.f32.mxu0 %v1783
        %v1785 = vand.u32 %v248, 4294901760
        %1786 = vmatmul.mubr.f32.gmra.mrb[0].mxu0 %v1785
        %v1787 = vpop.f32.mrb[0].mxu0
        %v1788 = vadd.f32 %v1607, %v1787
        %v1789 = vpop.f32.mrb[0].mxu0
        %v1790 = vand.u32 %v251, 4294901760
        %1791 = vmatprep.mubr.f32.mxu0 %v1790
        %v1792 = vand.u32 %v250, 4294901760
        %1793 = vmatmul.mubr.f32.gmra.mrb[0].mxu0 %v1792
        %v1794 = vpop.f32.mrb[0].mxu0
        %v1795 = vadd.f32 %v1614, %v1794
        %v1796 = vpop.f32.mrb[0].mxu0
        %v1797 = vand.u32 %v285, 4294901760
        %1798 = vmatprep.mubr.f32.mxu0 %v1797
        %v1799 = vand.u32 %v284, 4294901760
        %1800 = vmatmul.mubr.f32.gmra.mrb[0].mxu0 %v1799
        %v1801 = vpop.f32.mrb[0].mxu0
        %v1802 = vadd.f32 %v1621, %v1801
        %v1803 = vpop.f32.mrb[0].mxu0
        %v1804 = vand.u32 %v287, 4294901760
        %1805 = vmatprep.mubr.f32.mxu0 %v1804
        %v1806 = vand.u32 %v286, 4294901760
        %1807 = vmatmul.mubr.f32.gmra.mrb[0].mxu0 %v1806
        %v1808 = vpop.f32.mrb[0].mxu0
        %v1809 = vadd.f32 %v1628, %v1808
        %v1810 = vpop.f32.mrb[0].mxu0
        %v1811 = vand.u32 %v289, 4294901760
        %1812 = vmatprep.mubr.f32.mxu0 %v1811
        %v1813 = vand.u32 %v288, 4294901760
        %1814 = vmatmul.mubr.f32.gmra.mrb[0].mxu0 %v1813
        %v1815 = vpop.f32.mrb[0].mxu0
        %v1816 = vadd.f32 %v1635, %v1815
        %v1817 = vpop.f32.mrb[0].mxu0
        %v1818 = vand.u32 %v291, 4294901760
        %1819 = vmatprep.mubr.f32.mxu0 %v1818
        %v1820 = vand.u32 %v290, 4294901760
        %1821 = vmatmul.mubr.f32.gmra.mrb[0].mxu0 %v1820
        %v1822 = vpop.f32.mrb[0].mxu0
        %v1823 = vadd.f32 %v1642, %v1822
        %v1824 = vpop.f32.mrb[0].mxu0
        %1825 = vdwg.mxu0
        %v1826 = vsub.f32 16.0, %v1774
        %v1827 = vsub.f32 16.0, %v1781
        %v1828 = vsub.f32 16.0, %v1788
        %v1829 = vsub.f32 16.0, %v1795
        %v1830 = vsub.f32 %v1746, %v1802
        %v1831 = vsub.f32 %v1753, %v1809
        %v1832 = vsub.f32 %v1760, %v1816
        %v1833 = vsub.f32 %v1767, %v1823
        %v1834 = vsub.f32 %v1826, %v1830
        %v1835 = vsub.f32 %v1827, %v1831
        %v1836 = vsub.f32 %v1828, %v1832
        %v1837 = vsub.f32 %v1829, %v1833
        %v1838 = vmax.f32 %v1834, 0.0
        %v1839 = vmax.f32 %v1835, 0.0
        %v1840 = vmax.f32 %v1836, 0.0
        %v1841 = vmax.f32 %v1837, 0.0
        %vm1842 = vcmp.gt.f32.partialorder %v1774, 0.0
        %vm1843 = vcmp.gt.f32.partialorder %v1781, 0.0
        %vm1844 = vcmp.gt.f32.partialorder %v1788, 0.0
        %vm1845 = vcmp.gt.f32.partialorder %v1795, 0.0
        %v1846 = vsel %vm1842, %v1774, 1.0
        %v1847 = vsel %vm1843, %v1781, 1.0
        %v1848 = vsel %vm1844, %v1788, 1.0
        %v1849 = vsel %vm1845, %v1795, 1.0
        %v1850 = vrcp.pop %v1846
        %v1851 = vmul.f32 %v1802, %v1850
        %v1852 = vrcp.pop %v1847
        %v1853 = vmul.f32 %v1809, %v1852
        %v1854 = vrcp.pop %v1848
        %v1855 = vmul.f32 %v1816, %v1854
        %v1856 = vrcp.pop %v1849
        %v1857 = vmul.f32 %v1823, %v1856
        %v1858 = vlog2.pop %v1851
        %v1859 = vmul.f32 %v1858, 0.6931472
        %v1860 = vlog2.pop %v1853
        %v1861 = vmul.f32 %v1860, 0.6931472
        %v1862 = vlog2.pop %v1855
        %v1863 = vmul.f32 %v1862, 0.6931472
        %v1864 = vlog2.pop %v1857
        %v1865 = vmul.f32 %v1864, 0.6931472
        %v1866 = vmax.f32 %v1859, -100.0
        %v1867 = vmax.f32 %v1861, -100.0
        %v1868 = vmax.f32 %v1863, -100.0
        %v1869 = vmax.f32 %v1865, -100.0
        %v1870 = vsub.f32 0.0, %v1866
        %v1871 = vsub.f32 0.0, %v1867
        %v1872 = vsub.f32 0.0, %v1868
        %v1873 = vsub.f32 0.0, %v1869
        %vm1874 = vcmp.gt.f32.partialorder %v1826, 0.0
        %vm1875 = vcmp.gt.f32.partialorder %v1827, 0.0
        %vm1876 = vcmp.gt.f32.partialorder %v1828, 0.0
        %vm1877 = vcmp.gt.f32.partialorder %v1829, 0.0
        %v1878 = vsel %vm1874, %v1826, 1.0
        %v1879 = vsel %vm1875, %v1827, 1.0
        %v1880 = vsel %vm1876, %v1828, 1.0
        %v1881 = vsel %vm1877, %v1829, 1.0
        %v1882 = vrcp.pop %v1878
        %v1883 = vmul.f32 %v1838, %v1882
        %v1884 = vrcp.pop %v1879
        %v1885 = vmul.f32 %v1839, %v1884
        %v1886 = vrcp.pop %v1880
        %v1887 = vmul.f32 %v1840, %v1886
        %v1888 = vrcp.pop %v1881
        %v1889 = vmul.f32 %v1841, %v1888
        %v1890 = vlog2.pop %v1883
        %v1891 = vmul.f32 %v1890, 0.6931472
        %v1892 = vlog2.pop %v1885
        %v1893 = vmul.f32 %v1892, 0.6931472
        %v1894 = vlog2.pop %v1887
        %v1895 = vmul.f32 %v1894, 0.6931472
        %v1896 = vlog2.pop %v1889
        %v1897 = vmul.f32 %v1896, 0.6931472
        %v1898 = vmax.f32 %v1891, -100.0
        %v1899 = vmax.f32 %v1893, -100.0
        %v1900 = vmax.f32 %v1895, -100.0
        %v1901 = vmax.f32 %v1897, -100.0
        %v1902 = vsub.f32 0.0, %v1898
        %v1903 = vsub.f32 0.0, %v1899
        %v1904 = vsub.f32 0.0, %v1900
        %v1905 = vsub.f32 0.0, %v1901
        %1910 = vrot.lane.b32.xlu0 %v1902, 16
        %v1911 = vpop.permute.xlu0 %1910
        %1912 = vrot.lane.b32.xlu0 %v1903, 16
        %v1913 = vpop.permute.xlu0 %1912
        %1914 = vrot.lane.b32.xlu0 %v1904, 16
        %v1915 = vpop.permute.xlu0 %1914
        %1916 = vrot.lane.b32.xlu0 %v1905, 16
        %v1917 = vpop.permute.xlu0 %1916
        %v1922 = vadd.f32 %v1870, %v1911
        %v1923 = vadd.f32 %v1871, %v1913
        %v1924 = vadd.f32 %v1872, %v1915
        %v1925 = vadd.f32 %v1873, %v1917
        %vm1926 = vcmp.gt.f32.partialorder %v1746, 0.0
        %vm1927 = vcmp.gt.f32.partialorder %v1753, 0.0
        %vm1928 = vcmp.gt.f32.partialorder %v1760, 0.0
        %vm1929 = vcmp.gt.f32.partialorder %v1767, 0.0
        %v1930 = vsel %vm1926, %v1746, 1.0
        %v1931 = vsel %vm1927, %v1753, 1.0
        %v1932 = vsel %vm1928, %v1760, 1.0
        %v1933 = vsel %vm1929, %v1767, 1.0
        %1938 = vrot.lane.b32.xlu0 %v1930, 16
        %v1939 = vpop.permute.xlu0 %1938
        %1940 = vrot.lane.b32.xlu0 %v1931, 16
        %v1941 = vpop.permute.xlu0 %1940
        %1942 = vrot.lane.b32.xlu0 %v1932, 16
        %v1943 = vpop.permute.xlu0 %1942
        %1944 = vrot.lane.b32.xlu0 %v1933, 16
        %v1945 = vpop.permute.xlu0 %1944
        %v1950 = vrcp.pop %v1939
        %v1951 = vmul.f32 %v1802, %v1950
        %v1952 = vrcp.pop %v1941
        %v1953 = vmul.f32 %v1809, %v1952
        %v1954 = vrcp.pop %v1943
        %v1955 = vmul.f32 %v1816, %v1954
        %v1956 = vrcp.pop %v1945
        %v1957 = vmul.f32 %v1823, %v1956
        %v1958 = vlog2.pop %v1951
        %v1959 = vmul.f32 %v1958, 0.6931472
        %v1960 = vlog2.pop %v1953
        %v1961 = vmul.f32 %v1960, 0.6931472
        %v1962 = vlog2.pop %v1955
        %v1963 = vmul.f32 %v1962, 0.6931472
        %v1964 = vlog2.pop %v1957
        %v1965 = vmul.f32 %v1964, 0.6931472
        %v1966 = vmax.f32 %v1959, -100.0
        %v1967 = vmax.f32 %v1961, -100.0
        %v1968 = vmax.f32 %v1963, -100.0
        %v1969 = vmax.f32 %v1965, -100.0
        %v1970 = vsub.f32 0.0, %v1966
        %v1971 = vsub.f32 0.0, %v1967
        %v1972 = vsub.f32 0.0, %v1968
        %v1973 = vsub.f32 0.0, %v1969
        %v1974 = vadd.f32 %v1922, %v1970
        %v1975 = vadd.f32 %v1923, %v1971
        %v1976 = vadd.f32 %v1924, %v1972
        %v1977 = vadd.f32 %v1925, %v1973
        %v1978 = vld [vmem:[%s203] sm:$0xff]
        %v1979 = vld [vmem:[%s203 + $0x8] sm:$0xff]
        %v1980 = vadd.f32 %v340, %v342
        %v1981 = vadd.f32 %v341, %v343
        %v1982 = vadd.f32 %v344, %v346
        %v1983 = vadd.f32 %v345, %v347
        %v1984 = vadd.f32 %v1980, %v1982
        %v1985 = vadd.f32 %v1981, %v1983
        %v1986 = vadd.f32 %v1978, %v1984
        %v1987 = vadd.f32 %v1979, %v1985
        %1988 = vst [vmem:[%s203] sm:$0xff] %v1986
        %1989 = vst [vmem:[%s203 + $0x8] sm:$0xff] %v1987
        %v1990 = vld [vmem:[%s203] sm:$0xff]
        %v1991 = vadd.f32 %v1974, %v1975
        %v1992 = vadd.f32 %v1976, %v1977
        %v1993 = vadd.f32 %v1991, %v1992
        %v1994 = vmul.f32 %v1993, 16.0
        %1996 = vrot.lane.b32.xlu0 %v1994, 112
        %v1997 = vpop.permute.xlu0 %1996
        %v1999 = vadd.f32 %v1990, %v1997
        %vm2000 = vcmask 130048
        %2001 = vst.msk [vmem:[%s203] sm:$0xff] %vm2000, %v1999
        %s2002 = sand.u32 %s114, 1
        %s2003 = scalar_lea.sflag [#allocation3], %s2002
        %s2004 = sand.u32 %s114, 1
        %s2005 = smul.addr %s2004, 16
        %s2006 = scalar_lea.vmem [#allocation2], %s2005
        // Predicated region
        $region37: #{tpu_custom_call.1} parent=31 // pred_check
          %p2007 = pneg %p124
        $region38: #{tpu_custom_call.1} parent=31 // pred_check_branch
          %2009 = sbr.rel (%p2007) target = $region40
        $region39: #{tpu_custom_call.1} parent=31 // pred_region
          %s2011 = ssub.s32 256, 256
          %2012 = vsyncadd %s2003, %s2011
          %s2013 = smul.addr %s21, 2
          %s2014 = smul.addr %s2013, 128
          %s2015 = scalar_lea.hbm %s3, %s2014
          %s2017 = sshll.u32 %s2006, 4
          %s2018 = int_to_ptr.vmem [resolvable:$true] %s2017
          %2020 = dma.vmem_to_hbm [thread:$0]  %s2018, 256, %s2015, %s2003
        $region40: #{tpu_custom_call.1} parent=31 // pred_fallthru
          _
      $region32: #{tpu_custom_call.1} parent=5 // pred_fallthru
        _
      %p2021 = scmp.le.s32.totalorder 2, %s12
      // Predicated region
      $region41: #{tpu_custom_call.1} parent=5 // pred_check
        %p2022 = pneg %p2021
      $region42: #{tpu_custom_call.1} parent=5 // pred_check_branch
        %2024 = sbr.rel (%p2022) target = $region44
      $region43: #{tpu_custom_call.1} parent=5 // pred_region
        %s2025 = ssub.s32 %s12, 2
        // Predicated region
        $region45: #{tpu_custom_call.1} parent=43 // pred_check
          %p2026 = pneg %p130
        $region46: #{tpu_custom_call.1} parent=43 // pred_check_branch
          %2028 = sbr.rel (%p2026) target = $region48
        $region47: #{tpu_custom_call.1} parent=43 // pred_region
          %s2029 = sand.u32 %s115, 1
          %s2030 = scalar_lea.sflag [#allocation3], %s2029
          %s2031 = sand.u32 %s115, 1
          %s2032 = smul.addr %s2031, 16
          %s2033 = scalar_lea.vmem [#allocation2], %s2032
          %2034 = dma.done %s2030, 256
        $region48: #{tpu_custom_call.1} parent=43 // pred_fallthru
          _
      $region44: #{tpu_custom_call.1} parent=5 // pred_fallthru
        _
    $region6: #{tpu_custom_call.1} parent=1 // loop_footer
      %s16 = sadd.s32 1, %s12
    $region7: #{tpu_custom_call.1} parent=1 // loop_footer_branch
      %11 = sbr.rel target = $region3
    $region8: #{tpu_custom_call.1} parent=1 // loop_exit
      _
    %2035 = vsyncpa [#allocation3], 1
    %s2036 = scalar_lea.sflag [#allocation3], 1
    %2037 = vsyncpa %s2036, 1

</llo_original>
